<compile_context>
chip_gen: v7x
topology: tpu7x:2x2x1
jax: 0.10.0
libtpu: 0.0.40
codegen_flags: <defaults>
</compile_context>

<pallas_src>
import functools

import jax
import jax.numpy as jnp
from jax.experimental import pallas as pl
from jax.experimental.pallas import tpu as pltpu

HP = 128   # padded hidden width  (one lane tile; real H = 50)
DP = 128   # padded input width   (real D = 20)


def rnn2_fused_kernel(x_ref, w1ih_ref, wblk_ref, b1_ref, b2_ref,
                      out_ref, hn1_ref, xb_scr, *, seq_len, batch):
    """Fused, layer-skewed 2-layer RNN forward (single invocation, no grid).

    x_ref   : (S*B, DP)    padded time-major input, flattened over (S, B), f32
    w1ih_ref: (DP, HP)     layer-1 W_ih^T (zero padded), f32
    wblk_ref: (2HP, 2HP)   block-diag [[W1hh^T, W2ih^T], [0, W2hh^T]], bf16
    b1_ref  : (1, HP)      layer-1 combined bias b_ih + b_hh, f32
    b2_ref  : (1, HP)      layer-2 combined bias, f32
    out_ref : (S*B, HP)    layer-2 outputs (lane-dense slab), f32
    hn1_ref : (B, HP)      layer-1 final hidden state h1(S-1), f32
    xb_scr  : (S*B, HP)    VMEM scratch for the hoisted layer-1 input proj.
    """
    S, B = seq_len, batch

    # Hoisted layer-1 input projection for ALL timesteps (one big f32 MXU
    # matmul, bias fused).  Stored to VMEM scratch so the unrolled serial loop
    # below does not keep a 32-vreg slab live (avoids spill traffic).
    xb_scr[...] = jnp.dot(x_ref[...], w1ih_ref[...],
                          preferred_element_type=jnp.float32) + b1_ref[...]

    b2 = b2_ref[...]                                  # (1, HP)

    # Skewed recurrence. Step 0 is free: h1(-1) = 0  =>  h1(0) = tanh(xb1(0)).
    h1 = jnp.tanh(xb_scr[0:B, :])                     # h1(0)
    h2 = jnp.zeros((B, HP), jnp.float32)              # h2(-1) = 0

    # Combined steps s = 1..S:  [h1(s-1) | h2(s-2)] @ Wblk  ->  h1(s), h2(s-1).
    for s in range(1, S + 1):
        c = jnp.concatenate([h1, h2], axis=1).astype(jnp.bfloat16)   # (B, 2HP)
        mm = jnp.dot(c, wblk_ref[...], preferred_element_type=jnp.float32)
        # Layer-2 hidden at time s-1 (always valid for s in [1, S]).
        h2 = jnp.tanh(mm[:, HP:] + b2)
        out_ref[(s - 1) * B:s * B, :] = h2
        if s < S:
            # Layer-1 hidden at time s.
            h1 = jnp.tanh(mm[:, :HP] + xb_scr[s * B:(s + 1) * B, :])
        else:
            # Entering the last step, h1 == h1(S-1): layer-1 final state.
            hn1_ref[...] = h1


def prepare_params(params):
    """One-time constant-weight preparation (hoisted out of the hot path)."""
    (w1_ih, w1_hh, b1_ih, b1_hh), (w2_ih, w2_hh, b2_ih, b2_hh) = params
    H, D = w1_ih.shape

    w1ih_t = jnp.zeros((DP, HP), jnp.float32).at[:D, :H].set(
        w1_ih.T.astype(jnp.float32))
    b1 = jnp.zeros((1, HP), jnp.float32).at[0, :H].set(
        (b1_ih + b1_hh).astype(jnp.float32))
    b2 = jnp.zeros((1, HP), jnp.float32).at[0, :H].set(
        (b2_ih + b2_hh).astype(jnp.float32))

    # Block-diagonal recurrent weight (zero padding keeps padded lanes exactly
    # 0 through the recurrence since tanh(0) == 0):
    #   [ W1hh^T  W2ih^T ]
    #   [   0     W2hh^T ]
    wblk = jnp.zeros((2 * HP, 2 * HP), jnp.float32)
    wblk = wblk.at[:H, :H].set(w1_hh.T.astype(jnp.float32))
    wblk = wblk.at[:H, HP:HP + H].set(w2_ih.T.astype(jnp.float32))
    wblk = wblk.at[HP:HP + H, HP:HP + H].set(w2_hh.T.astype(jnp.float32))
    wblk = wblk.astype(jnp.bfloat16)      # bf16 operands, f32 MXU accumulation
    return w1ih_t, wblk, b1, b2


@functools.partial(jax.jit, static_argnames=("hidden_size",))
def rnn_forward(x, w1ih_t, wblk, b1, b2, *, hidden_size):
    """Mirrors Rnn.forward: (output, h_n) with h0 = zeros.

    x: (S, B, input_size) time-major.  Returns output (S, B, H), h_n (2, B, H).
    """
    S, B, D = x.shape
    x_pad = jnp.zeros((S * B, DP), jnp.float32).at[:, :D].set(
        x.reshape(S * B, D).astype(jnp.float32))

    kernel = functools.partial(rnn2_fused_kernel, seq_len=S, batch=B)
    vmem = pl.BlockSpec(memory_space=pltpu.MemorySpace.VMEM)

    out_pad, hn1_pad = pl.pallas_call(
        kernel,
        out_shape=(jax.ShapeDtypeStruct((S * B, HP), jnp.float32),
                   jax.ShapeDtypeStruct((B, HP), jnp.float32)),
        in_specs=[vmem] * 5,
        out_specs=(vmem, vmem),
        scratch_shapes=[pltpu.VMEM((S * B, HP), jnp.float32)],
    )(x_pad, w1ih_t, wblk, b1, b2)

    output = out_pad.reshape(S, B, HP)[:, :, :hidden_size]
    h_n = jnp.stack([hn1_pad[:, :hidden_size], output[-1]], axis=0)
    return output, h_n


def _rnn_reference(x, params):
    """Pure-JAX f32 reference of the same forward for the correctness check."""
    S, B, _ = x.shape
    layer_in = x.astype(jnp.float32)
    h_n = []
    for (w_ih, w_hh, b_ih, b_hh) in params:
        H = w_ih.shape[0]
        h = jnp.zeros((B, H), jnp.float32)
        outs = []
        for t in range(S):
            h = jnp.tanh(layer_in[t] @ w_ih.T + h @ w_hh.T + b_ih + b_hh)
            outs.append(h)
        layer_in = jnp.stack(outs, axis=0)
        h_n.append(h)
    return layer_in, jnp.stack(h_n, axis=0)


if __name__ == "__main__":
    # nn.RNN(input_size=20, hidden_size=50, num_layers=2), batch_first=False.
    # The PyTorch forward hard-codes h0 = zeros(2, 32, 50) -> batch must be 32.
    S, B = 8, 32
    input_size, hidden_size, num_layers = 20, 50, 2

    key = jax.random.PRNGKey(0)
    keys = jax.random.split(key, 1 + 4 * num_layers)
    x = jax.random.normal(keys[0], (S, B, input_size), jnp.float32)

    # Deterministic init matching PyTorch's U(-1/sqrt(H), 1/sqrt(H)) scheme.
    bound = 1.0 / (hidden_size ** 0.5)
    params = []
    ki = 1
    for l in range(num_layers):
        in_sz = input_size if l == 0 else hidden_size
        w_ih = jax.random.uniform(keys[ki], (hidden_size, in_sz),
                                  jnp.float32, -bound, bound); ki += 1
        w_hh = jax.random.uniform(keys[ki], (hidden_size, hidden_size),
                                  jnp.float32, -bound, bound); ki += 1
        b_ih = jax.random.uniform(keys[ki], (hidden_size,),
                                  jnp.float32, -bound, bound); ki += 1
        b_hh = jax.random.uniform(keys[ki], (hidden_size,),
                                  jnp.float32, -bound, bound); ki += 1
        params.append((w_ih, w_hh, b_ih, b_hh))

    # Constant-weight padding / block-diag assembly done ONCE (not per call).
    w1ih_t, wblk, b1, b2 = prepare_params(params)

    output, h_n = rnn_forward(x, w1ih_t, wblk, b1, b2, hidden_size=hidden_size)
    jax.block_until_ready((output, h_n))

    assert output.shape == (S, B, hidden_size)
    assert h_n.shape == (num_layers, B, hidden_size)

    # Numerical check against the pure-JAX f32 reference.  The recurrent
    # matmul uses bf16 operands (f32 accumulation) per the perf review, so the
    # tolerance is looser than a pure-f32 kernel would need.
    ref_out, ref_hn = _rnn_reference(x, params)
    assert jnp.allclose(output, ref_out, rtol=5e-2, atol=5e-2)
    assert jnp.allclose(h_n, ref_hn, rtol=5e-2, atol=5e-2)

    print("KERNEL_OK")
</pallas_src>

<mosaic_0001>
module attributes {stable_mosaic.version = 11 : i64} {
  func.func @rnn2_fused_kernel(%arg0: memref<256x128xf32, #tpu.memory_space<vmem>>, %arg1: memref<128x128xf32, #tpu.memory_space<vmem>>, %arg2: memref<256x256xbf16, #tpu.memory_space<vmem>>, %arg3: memref<1x128xf32, #tpu.memory_space<vmem>>, %arg4: memref<1x128xf32, #tpu.memory_space<vmem>>, %arg5: memref<256x128xf32, #tpu.memory_space<vmem>>, %arg6: memref<32x128xf32, #tpu.memory_space<vmem>>, %arg7: memref<256x128xf32, #tpu.memory_space<vmem>>) attributes {dimension_semantics = [], scalar_prefetch = 0 : i64, scratch_operands = 1 : i64, tpu.core_type = #tpu.core_type<tc>} {
    %c0 = arith.constant 0 : index
    %c0_0 = arith.constant 0 : index
    %0 = vector.load %arg0[%c0, %c0_0] : memref<256x128xf32, #tpu.memory_space<vmem>>, vector<256x128xf32>
    %c0_1 = arith.constant 0 : index
    %c0_2 = arith.constant 0 : index
    %1 = vector.load %arg1[%c0_1, %c0_2] : memref<128x128xf32, #tpu.memory_space<vmem>>, vector<128x128xf32>
    %cst = arith.constant dense<0.000000e+00> : vector<256x128xf32>
    %2 = tpu.matmul %0, %1, %cst {dimension_numbers = #tpu.dot_dimension_numbers<[1], [0], [0], [1], [0, 0, 1, 1], [], []>} : vector<256x128xf32>, vector<128x128xf32>, vector<256x128xf32> -> vector<256x128xf32>
    %c0_3 = arith.constant 0 : index
    %c0_4 = arith.constant 0 : index
    %3 = vector.load %arg3[%c0_3, %c0_4] : memref<1x128xf32, #tpu.memory_space<vmem>>, vector<1x128xf32>
    %4 = vector.broadcast %3 : vector<1x128xf32> to vector<256x128xf32>
    %5 = arith.addf %2, %4 : vector<256x128xf32>
    %c0_5 = arith.constant 0 : index
    %c0_6 = arith.constant 0 : index
    %6 = vector.load %arg7[%c0_5, %c0_6] : memref<256x128xf32, #tpu.memory_space<vmem>>, vector<256x128xf32>
    tpu.vector_store %arg7[%c0_5, %c0_6], %5 {strides = array<i32>} : memref<256x128xf32, #tpu.memory_space<vmem>>, vector<256x128xf32>,
    %c0_7 = arith.constant 0 : index
    %c0_8 = arith.constant 0 : index
    %7 = vector.load %arg4[%c0_7, %c0_8] : memref<1x128xf32, #tpu.memory_space<vmem>>, vector<1x128xf32>
    %c0_9 = arith.constant 0 : index
    %c0_10 = arith.constant 0 : index
    %8 = vector.load %arg7[%c0_9, %c0_10] : memref<256x128xf32, #tpu.memory_space<vmem>>, vector<32x128xf32>
    %9 = math.tanh %8 : vector<32x128xf32>
    %cst_11 = arith.constant 0.000000e+00 : f32
    %10 = vector.broadcast %cst_11 : f32 to vector<32x128xf32>
    %11 = tpu.concatenate %9, %10 in 1 : vector<32x128xf32>, vector<32x128xf32> -> vector<32x256xf32>
    %12 = arith.truncf %11 : vector<32x256xf32> to vector<32x256xbf16>
    %c0_12 = arith.constant 0 : index
    %c0_13 = arith.constant 0 : index
    %13 = vector.load %arg2[%c0_12, %c0_13] : memref<256x256xbf16, #tpu.memory_space<vmem>>, vector<256x256xbf16>
    %cst_14 = arith.constant dense<0.000000e+00> : vector<32x256xf32>
    %14 = tpu.matmul %12, %13, %cst_14 {dimension_numbers = #tpu.dot_dimension_numbers<[1], [0], [0], [1], [0, 0, 1, 1], [], []>} : vector<32x256xbf16>, vector<256x256xbf16>, vector<32x256xf32> -> vector<32x256xf32>
    %15 = vector.extract_strided_slice %14 {offsets = [0, 128], sizes = [32, 128], strides = [1, 1]} : vector<32x256xf32> to vector<32x128xf32>
    %16 = vector.broadcast %7 : vector<1x128xf32> to vector<32x128xf32>
    %17 = arith.addf %15, %16 : vector<32x128xf32>
    %18 = math.tanh %17 : vector<32x128xf32>
    %c0_15 = arith.constant 0 : index
    %c0_16 = arith.constant 0 : index
    %19 = vector.load %arg5[%c0_15, %c0_16] : memref<256x128xf32, #tpu.memory_space<vmem>>, vector<32x128xf32>
    tpu.vector_store %arg5[%c0_15, %c0_16], %18 {strides = array<i32>} : memref<256x128xf32, #tpu.memory_space<vmem>>, vector<32x128xf32>,
    %20 = vector.extract_strided_slice %14 {offsets = [0, 0], sizes = [32, 128], strides = [1, 1]} : vector<32x256xf32> to vector<32x128xf32>
    %c32 = arith.constant 32 : index
    %c0_17 = arith.constant 0 : index
    %21 = vector.load %arg7[%c32, %c0_17] : memref<256x128xf32, #tpu.memory_space<vmem>>, vector<32x128xf32>
    %22 = arith.addf %20, %21 : vector<32x128xf32>
    %23 = math.tanh %22 : vector<32x128xf32>
    %24 = tpu.concatenate %23, %18 in 1 : vector<32x128xf32>, vector<32x128xf32> -> vector<32x256xf32>
    %25 = arith.truncf %24 : vector<32x256xf32> to vector<32x256xbf16>
    %c0_18 = arith.constant 0 : index
    %c0_19 = arith.constant 0 : index
    %26 = vector.load %arg2[%c0_18, %c0_19] : memref<256x256xbf16, #tpu.memory_space<vmem>>, vector<256x256xbf16>
    %cst_20 = arith.constant dense<0.000000e+00> : vector<32x256xf32>
    %27 = tpu.matmul %25, %26, %cst_20 {dimension_numbers = #tpu.dot_dimension_numbers<[1], [0], [0], [1], [0, 0, 1, 1], [], []>} : vector<32x256xbf16>, vector<256x256xbf16>, vector<32x256xf32> -> vector<32x256xf32>
    %28 = vector.extract_strided_slice %27 {offsets = [0, 128], sizes = [32, 128], strides = [1, 1]} : vector<32x256xf32> to vector<32x128xf32>
    %29 = vector.broadcast %7 : vector<1x128xf32> to vector<32x128xf32>
    %30 = arith.addf %28, %29 : vector<32x128xf32>
    %31 = math.tanh %30 : vector<32x128xf32>
    %c32_21 = arith.constant 32 : index
    %c0_22 = arith.constant 0 : index
    %32 = vector.load %arg5[%c32_21, %c0_22] : memref<256x128xf32, #tpu.memory_space<vmem>>, vector<32x128xf32>
    tpu.vector_store %arg5[%c32_21, %c0_22], %31 {strides = array<i32>} : memref<256x128xf32, #tpu.memory_space<vmem>>, vector<32x128xf32>,
    %33 = vector.extract_strided_slice %27 {offsets = [0, 0], sizes = [32, 128], strides = [1, 1]} : vector<32x256xf32> to vector<32x128xf32>
    %c64 = arith.constant 64 : index
    %c0_23 = arith.constant 0 : index
    %34 = vector.load %arg7[%c64, %c0_23] : memref<256x128xf32, #tpu.memory_space<vmem>>, vector<32x128xf32>
    %35 = arith.addf %33, %34 : vector<32x128xf32>
    %36 = math.tanh %35 : vector<32x128xf32>
    %37 = tpu.concatenate %36, %31 in 1 : vector<32x128xf32>, vector<32x128xf32> -> vector<32x256xf32>
    %38 = arith.truncf %37 : vector<32x256xf32> to vector<32x256xbf16>
    %c0_24 = arith.constant 0 : index
    %c0_25 = arith.constant 0 : index
    %39 = vector.load %arg2[%c0_24, %c0_25] : memref<256x256xbf16, #tpu.memory_space<vmem>>, vector<256x256xbf16>
    %cst_26 = arith.constant dense<0.000000e+00> : vector<32x256xf32>
    %40 = tpu.matmul %38, %39, %cst_26 {dimension_numbers = #tpu.dot_dimension_numbers<[1], [0], [0], [1], [0, 0, 1, 1], [], []>} : vector<32x256xbf16>, vector<256x256xbf16>, vector<32x256xf32> -> vector<32x256xf32>
    %41 = vector.extract_strided_slice %40 {offsets = [0, 128], sizes = [32, 128], strides = [1, 1]} : vector<32x256xf32> to vector<32x128xf32>
    %42 = vector.broadcast %7 : vector<1x128xf32> to vector<32x128xf32>
    %43 = arith.addf %41, %42 : vector<32x128xf32>
    %44 = math.tanh %43 : vector<32x128xf32>
    %c64_27 = arith.constant 64 : index
    %c0_28 = arith.constant 0 : index
    %45 = vector.load %arg5[%c64_27, %c0_28] : memref<256x128xf32, #tpu.memory_space<vmem>>, vector<32x128xf32>
    tpu.vector_store %arg5[%c64_27, %c0_28], %44 {strides = array<i32>} : memref<256x128xf32, #tpu.memory_space<vmem>>, vector<32x128xf32>,
    %46 = vector.extract_strided_slice %40 {offsets = [0, 0], sizes = [32, 128], strides = [1, 1]} : vector<32x256xf32> to vector<32x128xf32>
    %c96 = arith.constant 96 : index
    %c0_29 = arith.constant 0 : index
    %47 = vector.load %arg7[%c96, %c0_29] : memref<256x128xf32, #tpu.memory_space<vmem>>, vector<32x128xf32>
    %48 = arith.addf %46, %47 : vector<32x128xf32>
    %49 = math.tanh %48 : vector<32x128xf32>
    %50 = tpu.concatenate %49, %44 in 1 : vector<32x128xf32>, vector<32x128xf32> -> vector<32x256xf32>
    %51 = arith.truncf %50 : vector<32x256xf32> to vector<32x256xbf16>
    %c0_30 = arith.constant 0 : index
    %c0_31 = arith.constant 0 : index
    %52 = vector.load %arg2[%c0_30, %c0_31] : memref<256x256xbf16, #tpu.memory_space<vmem>>, vector<256x256xbf16>
    %cst_32 = arith.constant dense<0.000000e+00> : vector<32x256xf32>
    %53 = tpu.matmul %51, %52, %cst_32 {dimension_numbers = #tpu.dot_dimension_numbers<[1], [0], [0], [1], [0, 0, 1, 1], [], []>} : vector<32x256xbf16>, vector<256x256xbf16>, vector<32x256xf32> -> vector<32x256xf32>
    %54 = vector.extract_strided_slice %53 {offsets = [0, 128], sizes = [32, 128], strides = [1, 1]} : vector<32x256xf32> to vector<32x128xf32>
    %55 = vector.broadcast %7 : vector<1x128xf32> to vector<32x128xf32>
    %56 = arith.addf %54, %55 : vector<32x128xf32>
    %57 = math.tanh %56 : vector<32x128xf32>
    %c96_33 = arith.constant 96 : index
    %c0_34 = arith.constant 0 : index
    %58 = vector.load %arg5[%c96_33, %c0_34] : memref<256x128xf32, #tpu.memory_space<vmem>>, vector<32x128xf32>
    tpu.vector_store %arg5[%c96_33, %c0_34], %57 {strides = array<i32>} : memref<256x128xf32, #tpu.memory_space<vmem>>, vector<32x128xf32>,
    %59 = vector.extract_strided_slice %53 {offsets = [0, 0], sizes = [32, 128], strides = [1, 1]} : vector<32x256xf32> to vector<32x128xf32>
    %c128 = arith.constant 128 : index
    %c0_35 = arith.constant 0 : index
    %60 = vector.load %arg7[%c128, %c0_35] : memref<256x128xf32, #tpu.memory_space<vmem>>, vector<32x128xf32>
    %61 = arith.addf %59, %60 : vector<32x128xf32>
    %62 = math.tanh %61 : vector<32x128xf32>
    %63 = tpu.concatenate %62, %57 in 1 : vector<32x128xf32>, vector<32x128xf32> -> vector<32x256xf32>
    %64 = arith.truncf %63 : vector<32x256xf32> to vector<32x256xbf16>
    %c0_36 = arith.constant 0 : index
    %c0_37 = arith.constant 0 : index
    %65 = vector.load %arg2[%c0_36, %c0_37] : memref<256x256xbf16, #tpu.memory_space<vmem>>, vector<256x256xbf16>
    %cst_38 = arith.constant dense<0.000000e+00> : vector<32x256xf32>
    %66 = tpu.matmul %64, %65, %cst_38 {dimension_numbers = #tpu.dot_dimension_numbers<[1], [0], [0], [1], [0, 0, 1, 1], [], []>} : vector<32x256xbf16>, vector<256x256xbf16>, vector<32x256xf32> -> vector<32x256xf32>
    %67 = vector.extract_strided_slice %66 {offsets = [0, 128], sizes = [32, 128], strides = [1, 1]} : vector<32x256xf32> to vector<32x128xf32>
    %68 = vector.broadcast %7 : vector<1x128xf32> to vector<32x128xf32>
    %69 = arith.addf %67, %68 : vector<32x128xf32>
    %70 = math.tanh %69 : vector<32x128xf32>
    %c128_39 = arith.constant 128 : index
    %c0_40 = arith.constant 0 : index
    %71 = vector.load %arg5[%c128_39, %c0_40] : memref<256x128xf32, #tpu.memory_space<vmem>>, vector<32x128xf32>
    tpu.vector_store %arg5[%c128_39, %c0_40], %70 {strides = array<i32>} : memref<256x128xf32, #tpu.memory_space<vmem>>, vector<32x128xf32>,
    %72 = vector.extract_strided_slice %66 {offsets = [0, 0], sizes = [32, 128], strides = [1, 1]} : vector<32x256xf32> to vector<32x128xf32>
    %c160 = arith.constant 160 : index
    %c0_41 = arith.constant 0 : index
    %73 = vector.load %arg7[%c160, %c0_41] : memref<256x128xf32, #tpu.memory_space<vmem>>, vector<32x128xf32>
    %74 = arith.addf %72, %73 : vector<32x128xf32>
    %75 = math.tanh %74 : vector<32x128xf32>
    %76 = tpu.concatenate %75, %70 in 1 : vector<32x128xf32>, vector<32x128xf32> -> vector<32x256xf32>
    %77 = arith.truncf %76 : vector<32x256xf32> to vector<32x256xbf16>
    %c0_42 = arith.constant 0 : index
    %c0_43 = arith.constant 0 : index
    %78 = vector.load %arg2[%c0_42, %c0_43] : memref<256x256xbf16, #tpu.memory_space<vmem>>, vector<256x256xbf16>
    %cst_44 = arith.constant dense<0.000000e+00> : vector<32x256xf32>
    %79 = tpu.matmul %77, %78, %cst_44 {dimension_numbers = #tpu.dot_dimension_numbers<[1], [0], [0], [1], [0, 0, 1, 1], [], []>} : vector<32x256xbf16>, vector<256x256xbf16>, vector<32x256xf32> -> vector<32x256xf32>
    %80 = vector.extract_strided_slice %79 {offsets = [0, 128], sizes = [32, 128], strides = [1, 1]} : vector<32x256xf32> to vector<32x128xf32>
    %81 = vector.broadcast %7 : vector<1x128xf32> to vector<32x128xf32>
    %82 = arith.addf %80, %81 : vector<32x128xf32>
    %83 = math.tanh %82 : vector<32x128xf32>
    %c160_45 = arith.constant 160 : index
    %c0_46 = arith.constant 0 : index
    %84 = vector.load %arg5[%c160_45, %c0_46] : memref<256x128xf32, #tpu.memory_space<vmem>>, vector<32x128xf32>
    tpu.vector_store %arg5[%c160_45, %c0_46], %83 {strides = array<i32>} : memref<256x128xf32, #tpu.memory_space<vmem>>, vector<32x128xf32>,
    %85 = vector.extract_strided_slice %79 {offsets = [0, 0], sizes = [32, 128], strides = [1, 1]} : vector<32x256xf32> to vector<32x128xf32>
    %c192 = arith.constant 192 : index
    %c0_47 = arith.constant 0 : index
    %86 = vector.load %arg7[%c192, %c0_47] : memref<256x128xf32, #tpu.memory_space<vmem>>, vector<32x128xf32>
    %87 = arith.addf %85, %86 : vector<32x128xf32>
    %88 = math.tanh %87 : vector<32x128xf32>
    %89 = tpu.concatenate %88, %83 in 1 : vector<32x128xf32>, vector<32x128xf32> -> vector<32x256xf32>
    %90 = arith.truncf %89 : vector<32x256xf32> to vector<32x256xbf16>
    %c0_48 = arith.constant 0 : index
    %c0_49 = arith.constant 0 : index
    %91 = vector.load %arg2[%c0_48, %c0_49] : memref<256x256xbf16, #tpu.memory_space<vmem>>, vector<256x256xbf16>
    %cst_50 = arith.constant dense<0.000000e+00> : vector<32x256xf32>
    %92 = tpu.matmul %90, %91, %cst_50 {dimension_numbers = #tpu.dot_dimension_numbers<[1], [0], [0], [1], [0, 0, 1, 1], [], []>} : vector<32x256xbf16>, vector<256x256xbf16>, vector<32x256xf32> -> vector<32x256xf32>
    %93 = vector.extract_strided_slice %92 {offsets = [0, 128], sizes = [32, 128], strides = [1, 1]} : vector<32x256xf32> to vector<32x128xf32>
    %94 = vector.broadcast %7 : vector<1x128xf32> to vector<32x128xf32>
    %95 = arith.addf %93, %94 : vector<32x128xf32>
    %96 = math.tanh %95 : vector<32x128xf32>
    %c192_51 = arith.constant 192 : index
    %c0_52 = arith.constant 0 : index
    %97 = vector.load %arg5[%c192_51, %c0_52] : memref<256x128xf32, #tpu.memory_space<vmem>>, vector<32x128xf32>
    tpu.vector_store %arg5[%c192_51, %c0_52], %96 {strides = array<i32>} : memref<256x128xf32, #tpu.memory_space<vmem>>, vector<32x128xf32>,
    %98 = vector.extract_strided_slice %92 {offsets = [0, 0], sizes = [32, 128], strides = [1, 1]} : vector<32x256xf32> to vector<32x128xf32>
    %c224 = arith.constant 224 : index
    %c0_53 = arith.constant 0 : index
    %99 = vector.load %arg7[%c224, %c0_53] : memref<256x128xf32, #tpu.memory_space<vmem>>, vector<32x128xf32>
    %100 = arith.addf %98, %99 : vector<32x128xf32>
    %101 = math.tanh %100 : vector<32x128xf32>
    %102 = tpu.concatenate %101, %96 in 1 : vector<32x128xf32>, vector<32x128xf32> -> vector<32x256xf32>
    %103 = arith.truncf %102 : vector<32x256xf32> to vector<32x256xbf16>
    %c0_54 = arith.constant 0 : index
    %c0_55 = arith.constant 0 : index
    %104 = vector.load %arg2[%c0_54, %c0_55] : memref<256x256xbf16, #tpu.memory_space<vmem>>, vector<256x256xbf16>
    %cst_56 = arith.constant dense<0.000000e+00> : vector<32x256xf32>
    %105 = tpu.matmul %103, %104, %cst_56 {dimension_numbers = #tpu.dot_dimension_numbers<[1], [0], [0], [1], [0, 0, 1, 1], [], []>} : vector<32x256xbf16>, vector<256x256xbf16>, vector<32x256xf32> -> vector<32x256xf32>
    %106 = vector.extract_strided_slice %105 {offsets = [0, 128], sizes = [32, 128], strides = [1, 1]} : vector<32x256xf32> to vector<32x128xf32>
    %107 = vector.broadcast %7 : vector<1x128xf32> to vector<32x128xf32>
    %108 = arith.addf %106, %107 : vector<32x128xf32>
    %109 = math.tanh %108 : vector<32x128xf32>
    %c224_57 = arith.constant 224 : index
    %c0_58 = arith.constant 0 : index
    %110 = vector.load %arg5[%c224_57, %c0_58] : memref<256x128xf32, #tpu.memory_space<vmem>>, vector<32x128xf32>
    tpu.vector_store %arg5[%c224_57, %c0_58], %109 {strides = array<i32>} : memref<256x128xf32, #tpu.memory_space<vmem>>, vector<32x128xf32>,
    %c0_59 = arith.constant 0 : index
    %c0_60 = arith.constant 0 : index
    %111 = vector.load %arg6[%c0_59, %c0_60] : memref<32x128xf32, #tpu.memory_space<vmem>>, vector<32x128xf32>
    tpu.vector_store %arg6[%c0_59, %c0_60], %101 {strides = array<i32>} : memref<32x128xf32, #tpu.memory_space<vmem>>, vector<32x128xf32>,
    return
  }
}

</mosaic_0001>

<llo_original>
// kernel: rnn_forward.1
$region0: #{rnn_forward.1}
  #allocation0 [shape = 'u32[]', space=smem, size = 0x4, offset = 0x4, fixed_abs, tag = 'smem constant byte address 0x4 - core index']
  #allocation1 [shape = 'u32[144,128]{1,0:T(1,128)}', space=vmem, size = 0x12000, scoped, tag = 'internal scratch']
  #allocation2 [shape = 'f32[256,128]{1,0:T(8,128)}', space=vmem, size = 0x20000, scoped, tag = 'scratch operand']
  %s0 = inlined_call_operand.vmem [shape: f32[256,128], index: 0, kind: input, shape index: {}]
  %s1 = inlined_call_operand.vmem [shape: f32[128,128], index: 1, kind: input, shape index: {}]
  %s2 = inlined_call_operand.vmem [shape: bf16[256,256], index: 2, kind: input, shape index: {}]
  %s3 = inlined_call_operand.vmem [shape: f32[1,128], index: 3, kind: input, shape index: {}]
  %s4 = inlined_call_operand.vmem [shape: f32[1,128], index: 4, kind: input, shape index: {}]
  %s5 = inlined_call_operand.vmem [shape: f32[256,128], index: 5, kind: output, shape index: {0}]
  %s6 = inlined_call_operand.vmem [shape: f32[32,128], index: 6, kind: output, shape index: {1}]
  %7 = xla_tuple %s5, %s6
  %s8 = sld [smem:[#allocation0]]
  $region38: #{rnn_forward.1} parent=0
    _
  %s10 = ssub.s32 1, %s8
  %s11 = scalar_select 0, %s10, %s8
  // Predicated region
  $region2: #{rnn_forward.1} parent=0 // pred_check
    _
  $region3: #{rnn_forward.1} parent=0 // pred_check_branch
    %13 = sbr.rel (0) target = $region5
  $region4: #{rnn_forward.1} parent=0 // pred_region
    _
  $region5: #{rnn_forward.1} parent=0 // pred_fallthru
    _
  // Predicated region
  $region6: #{rnn_forward.1} parent=0 // pred_check
    _
  $region7: #{rnn_forward.1} parent=0 // pred_check_branch
    %15 = sbr.rel (0) target = $region9
  $region8: #{rnn_forward.1} parent=0 // pred_region
    _
  $region9: #{rnn_forward.1} parent=0 // pred_fallthru
    _
  // Predicated region
  $region10: #{rnn_forward.1} parent=0 // pred_check
    _
  $region11: #{rnn_forward.1} parent=0 // pred_check_branch
    %17 = sbr.rel (0) target = $region13
  $region12: #{rnn_forward.1} parent=0 // pred_region
    _
  $region13: #{rnn_forward.1} parent=0 // pred_fallthru
    _
  // Predicated region
  $region14: #{rnn_forward.1} parent=0 // pred_check
    _
  $region15: #{rnn_forward.1} parent=0 // pred_check_branch
    %19 = sbr.rel (0) target = $region17
  $region16: #{rnn_forward.1} parent=0 // pred_region
    _
  $region17: #{rnn_forward.1} parent=0 // pred_fallthru
    _
  // Predicated region
  $region18: #{rnn_forward.1} parent=0 // pred_check
    _
  $region19: #{rnn_forward.1} parent=0 // pred_check_branch
    %21 = sbr.rel (0) target = $region21
  $region20: #{rnn_forward.1} parent=0 // pred_region
    _
  $region21: #{rnn_forward.1} parent=0 // pred_fallthru
    _
  %v22 = vld [vmem:[%s0] sm:$0xff]
  %v23 = vld [vmem:[%s0 + $0x8] sm:$0xff]
  %v24 = vld [vmem:[%s0 + $0x10] sm:$0xff]
  %v25 = vld [vmem:[%s0 + $0x18] sm:$0xff]
  %v26 = vld [vmem:[%s0 + $0x20] sm:$0xff]
  %v27 = vld [vmem:[%s0 + $0x28] sm:$0xff]
  %v28 = vld [vmem:[%s0 + $0x30] sm:$0xff]
  %v29 = vld [vmem:[%s0 + $0x38] sm:$0xff]
  %v30 = vld [vmem:[%s0 + $0x40] sm:$0xff]
  %v31 = vld [vmem:[%s0 + $0x48] sm:$0xff]
  %v32 = vld [vmem:[%s0 + $0x50] sm:$0xff]
  %v33 = vld [vmem:[%s0 + $0x58] sm:$0xff]
  %v34 = vld [vmem:[%s0 + $0x60] sm:$0xff]
  %v35 = vld [vmem:[%s0 + $0x68] sm:$0xff]
  %v36 = vld [vmem:[%s0 + $0x70] sm:$0xff]
  %v37 = vld [vmem:[%s0 + $0x78] sm:$0xff]
  %v38 = vld [vmem:[%s0 + $0x80] sm:$0xff]
  %v39 = vld [vmem:[%s0 + $0x88] sm:$0xff]
  %v40 = vld [vmem:[%s0 + $0x90] sm:$0xff]
  %v41 = vld [vmem:[%s0 + $0x98] sm:$0xff]
  %v42 = vld [vmem:[%s0 + $0xa0] sm:$0xff]
  %v43 = vld [vmem:[%s0 + $0xa8] sm:$0xff]
  %v44 = vld [vmem:[%s0 + $0xb0] sm:$0xff]
  %v45 = vld [vmem:[%s0 + $0xb8] sm:$0xff]
  %v46 = vld [vmem:[%s0 + $0xc0] sm:$0xff]
  %v47 = vld [vmem:[%s0 + $0xc8] sm:$0xff]
  %v48 = vld [vmem:[%s0 + $0xd0] sm:$0xff]
  %v49 = vld [vmem:[%s0 + $0xd8] sm:$0xff]
  %v50 = vld [vmem:[%s0 + $0xe0] sm:$0xff]
  %v51 = vld [vmem:[%s0 + $0xe8] sm:$0xff]
  %v52 = vld [vmem:[%s0 + $0xf0] sm:$0xff]
  %v53 = vld [vmem:[%s0 + $0xf8] sm:$0xff]
  %v54 = vld [vmem:[%s1] sm:$0xff]
  %v55 = vld [vmem:[%s1 + $0x8] sm:$0xff]
  %v56 = vld [vmem:[%s1 + $0x10] sm:$0xff]
  %v57 = vld [vmem:[%s1 + $0x18] sm:$0xff]
  %v58 = vld [vmem:[%s1 + $0x20] sm:$0xff]
  %v59 = vld [vmem:[%s1 + $0x28] sm:$0xff]
  %v60 = vld [vmem:[%s1 + $0x30] sm:$0xff]
  %v61 = vld [vmem:[%s1 + $0x38] sm:$0xff]
  %v62 = vld [vmem:[%s1 + $0x40] sm:$0xff]
  %v63 = vld [vmem:[%s1 + $0x48] sm:$0xff]
  %v64 = vld [vmem:[%s1 + $0x50] sm:$0xff]
  %v65 = vld [vmem:[%s1 + $0x58] sm:$0xff]
  %v66 = vld [vmem:[%s1 + $0x60] sm:$0xff]
  %v67 = vld [vmem:[%s1 + $0x68] sm:$0xff]
  %v68 = vld [vmem:[%s1 + $0x70] sm:$0xff]
  %v69 = vld [vmem:[%s1 + $0x78] sm:$0xff]
  %v70 = vld [vmem:[%s3] sm:$0x1]
  %v72 = vlaneseq
  %v73 = vshrl.u32 %v72, 7
  %v74 = vsub.s32 0, %v73
  %v75 = vrot.slane %v70, %v74
  %77 = vmatprep.subr.mxu0 0.0
  %78 = vmatpush1.msra.mxu0 %v54
  %79 = vmatprep.subr.mxu0 0.0
  %80 = vmatpush1.msra.mxu0 %v55
  %81 = vmatprep.subr.mxu0 0.0
  %82 = vmatpush1.msra.mxu0 %v56
  %83 = vmatprep.subr.mxu0 0.0
  %84 = vmatpush1.msra.mxu0 %v57
  %85 = vmatprep.subr.mxu0 0.0
  %86 = vmatpush1.msra.mxu0 %v58
  %87 = vmatprep.subr.mxu0 0.0
  %88 = vmatpush1.msra.mxu0 %v59
  %89 = vmatprep.subr.mxu0 0.0
  %90 = vmatpush1.msra.mxu0 %v60
  %91 = vmatprep.subr.mxu0 0.0
  %92 = vmatpush1.msra.mxu0 %v61
  %93 = vmatprep.subr.mxu0 0.0
  %94 = vmatpush1.msra.mxu0 %v62
  %95 = vmatprep.subr.mxu0 0.0
  %96 = vmatpush1.msra.mxu0 %v63
  %97 = vmatprep.subr.mxu0 0.0
  %98 = vmatpush1.msra.mxu0 %v64
  %99 = vmatprep.subr.mxu0 0.0
  %100 = vmatpush1.msra.mxu0 %v65
  %101 = vmatprep.subr.mxu0 0.0
  %102 = vmatpush1.msra.mxu0 %v66
  %103 = vmatprep.subr.mxu0 0.0
  %104 = vmatpush1.msra.mxu0 %v67
  %105 = vmatprep.subr.mxu0 0.0
  %106 = vmatpush1.msra.mxu0 %v68
  %107 = vmatprep.subr.mxu0 0.0
  %108 = vmatpush1.msra.mxu0 %v69
  %109 = vmatprep.subr.mxu0 0.0
  %110 = vmatpush1.msra.mxu0 0.0
  %111 = vmatprep.subr.mxu0 0.0
  %112 = vmatpush1.msra.mxu0 0.0
  %113 = vmatprep.subr.mxu0 0.0
  %114 = vmatpush1.msra.mxu0 0.0
  %115 = vmatprep.subr.mxu0 0.0
  %116 = vmatpush1.msra.mxu0 0.0
  %117 = vmatprep.subr.mxu0 0.0
  %118 = vmatpush1.msra.mxu0 0.0
  %119 = vmatprep.subr.mxu0 0.0
  %120 = vmatpush1.msra.mxu0 0.0
  %121 = vmatprep.subr.mxu0 0.0
  %122 = vmatpush1.msra.mxu0 0.0
  %123 = vmatprep.subr.mxu0 0.0
  %124 = vmatpush1.msra.mxu0 0.0
  %125 = vmatprep.subr.mxu0 0.0
  %126 = vmatpush1.msra.mxu0 0.0
  %127 = vmatprep.subr.mxu0 0.0
  %128 = vmatpush1.msra.mxu0 0.0
  %129 = vmatprep.subr.mxu0 0.0
  %130 = vmatpush1.msra.mxu0 0.0
  %131 = vmatprep.subr.mxu0 0.0
  %132 = vmatpush1.msra.mxu0 0.0
  %133 = vmatprep.subr.mxu0 0.0
  %134 = vmatpush1.msra.mxu0 0.0
  %135 = vmatprep.subr.mxu0 0.0
  %136 = vmatpush1.msra.mxu0 0.0
  %137 = vmatprep.subr.mxu0 0.0
  %138 = vmatpush1.msra.mxu0 0.0
  %139 = vmatprep.subr.mxu0 0.0
  %140 = vmatpush1.msra.mxu0 0.0
  %141 = vmatprep.mubr.f32.mxu0 0.0
  %142 = vmatmul.mubr.f32.gmra.mrb[0].mxu0 %v22
  %v143 = vpop.f32.mrb[0].mxu0
  %v144 = vadd.f32 %v75, %v143
  %v145 = vpop.f32.mrb[0].mxu0
  %146 = vmatprep.mubr.f32.mxu0 0.0
  %147 = vmatmul.mubr.f32.gmra.mrb[0].mxu0 %v23
  %v148 = vpop.f32.mrb[0].mxu0
  %v149 = vadd.f32 %v75, %v148
  %v150 = vpop.f32.mrb[0].mxu0
  %151 = vmatprep.mubr.f32.mxu0 0.0
  %152 = vmatmul.mubr.f32.gmra.mrb[0].mxu0 %v24
  %v153 = vpop.f32.mrb[0].mxu0
  %v154 = vadd.f32 %v75, %v153
  %v155 = vpop.f32.mrb[0].mxu0
  %156 = vmatprep.mubr.f32.mxu0 0.0
  %157 = vmatmul.mubr.f32.gmra.mrb[0].mxu0 %v25
  %v158 = vpop.f32.mrb[0].mxu0
  %v159 = vadd.f32 %v75, %v158
  %v160 = vpop.f32.mrb[0].mxu0
  %161 = vmatprep.mubr.f32.mxu0 0.0
  %162 = vmatmul.mubr.f32.gmra.mrb[0].mxu0 %v26
  %v163 = vpop.f32.mrb[0].mxu0
  %v164 = vadd.f32 %v75, %v163
  %v165 = vpop.f32.mrb[0].mxu0
  %166 = vmatprep.mubr.f32.mxu0 0.0
  %167 = vmatmul.mubr.f32.gmra.mrb[0].mxu0 %v27
  %v168 = vpop.f32.mrb[0].mxu0
  %v169 = vadd.f32 %v75, %v168
  %v170 = vpop.f32.mrb[0].mxu0
  %171 = vmatprep.mubr.f32.mxu0 0.0
  %172 = vmatmul.mubr.f32.gmra.mrb[0].mxu0 %v28
  %v173 = vpop.f32.mrb[0].mxu0
  %v174 = vadd.f32 %v75, %v173
  %v175 = vpop.f32.mrb[0].mxu0
  %176 = vmatprep.mubr.f32.mxu0 0.0
  %177 = vmatmul.mubr.f32.gmra.mrb[0].mxu0 %v29
  %v178 = vpop.f32.mrb[0].mxu0
  %v179 = vadd.f32 %v75, %v178
  %v180 = vpop.f32.mrb[0].mxu0
  %181 = vmatprep.mubr.f32.mxu0 0.0
  %182 = vmatmul.mubr.f32.gmra.mrb[0].mxu0 %v30
  %v183 = vpop.f32.mrb[0].mxu0
  %v184 = vadd.f32 %v75, %v183
  %v185 = vpop.f32.mrb[0].mxu0
  %186 = vmatprep.mubr.f32.mxu0 0.0
  %187 = vmatmul.mubr.f32.gmra.mrb[0].mxu0 %v31
  %v188 = vpop.f32.mrb[0].mxu0
  %v189 = vadd.f32 %v75, %v188
  %v190 = vpop.f32.mrb[0].mxu0
  %191 = vmatprep.mubr.f32.mxu0 0.0
  %192 = vmatmul.mubr.f32.gmra.mrb[0].mxu0 %v32
  %v193 = vpop.f32.mrb[0].mxu0
  %v194 = vadd.f32 %v75, %v193
  %v195 = vpop.f32.mrb[0].mxu0
  %196 = vmatprep.mubr.f32.mxu0 0.0
  %197 = vmatmul.mubr.f32.gmra.mrb[0].mxu0 %v33
  %v198 = vpop.f32.mrb[0].mxu0
  %v199 = vadd.f32 %v75, %v198
  %v200 = vpop.f32.mrb[0].mxu0
  %201 = vmatprep.mubr.f32.mxu0 0.0
  %202 = vmatmul.mubr.f32.gmra.mrb[0].mxu0 %v34
  %v203 = vpop.f32.mrb[0].mxu0
  %v204 = vadd.f32 %v75, %v203
  %v205 = vpop.f32.mrb[0].mxu0
  %206 = vmatprep.mubr.f32.mxu0 0.0
  %207 = vmatmul.mubr.f32.gmra.mrb[0].mxu0 %v35
  %v208 = vpop.f32.mrb[0].mxu0
  %v209 = vadd.f32 %v75, %v208
  %v210 = vpop.f32.mrb[0].mxu0
  %211 = vmatprep.mubr.f32.mxu0 0.0
  %212 = vmatmul.mubr.f32.gmra.mrb[0].mxu0 %v36
  %v213 = vpop.f32.mrb[0].mxu0
  %v214 = vadd.f32 %v75, %v213
  %v215 = vpop.f32.mrb[0].mxu0
  %216 = vmatprep.mubr.f32.mxu0 0.0
  %217 = vmatmul.mubr.f32.gmra.mrb[0].mxu0 %v37
  %v218 = vpop.f32.mrb[0].mxu0
  %v219 = vadd.f32 %v75, %v218
  %v220 = vpop.f32.mrb[0].mxu0
  %221 = vmatprep.mubr.f32.mxu0 0.0
  %222 = vmatmul.mubr.f32.gmra.mrb[0].mxu0 %v38
  %v223 = vpop.f32.mrb[0].mxu0
  %v224 = vadd.f32 %v75, %v223
  %v225 = vpop.f32.mrb[0].mxu0
  %226 = vmatprep.mubr.f32.mxu0 0.0
  %227 = vmatmul.mubr.f32.gmra.mrb[0].mxu0 %v39
  %v228 = vpop.f32.mrb[0].mxu0
  %v229 = vadd.f32 %v75, %v228
  %v230 = vpop.f32.mrb[0].mxu0
  %231 = vmatprep.mubr.f32.mxu0 0.0
  %232 = vmatmul.mubr.f32.gmra.mrb[0].mxu0 %v40
  %v233 = vpop.f32.mrb[0].mxu0
  %v234 = vadd.f32 %v75, %v233
  %v235 = vpop.f32.mrb[0].mxu0
  %236 = vmatprep.mubr.f32.mxu0 0.0
  %237 = vmatmul.mubr.f32.gmra.mrb[0].mxu0 %v41
  %v238 = vpop.f32.mrb[0].mxu0
  %v239 = vadd.f32 %v75, %v238
  %v240 = vpop.f32.mrb[0].mxu0
  %241 = vmatprep.mubr.f32.mxu0 0.0
  %242 = vmatmul.mubr.f32.gmra.mrb[0].mxu0 %v42
  %v243 = vpop.f32.mrb[0].mxu0
  %v244 = vadd.f32 %v75, %v243
  %v245 = vpop.f32.mrb[0].mxu0
  %246 = vmatprep.mubr.f32.mxu0 0.0
  %247 = vmatmul.mubr.f32.gmra.mrb[0].mxu0 %v43
  %v248 = vpop.f32.mrb[0].mxu0
  %v249 = vadd.f32 %v75, %v248
  %v250 = vpop.f32.mrb[0].mxu0
  %251 = vmatprep.mubr.f32.mxu0 0.0
  %252 = vmatmul.mubr.f32.gmra.mrb[0].mxu0 %v44
  %v253 = vpop.f32.mrb[0].mxu0
  %v254 = vadd.f32 %v75, %v253
  %v255 = vpop.f32.mrb[0].mxu0
  %256 = vmatprep.mubr.f32.mxu0 0.0
  %257 = vmatmul.mubr.f32.gmra.mrb[0].mxu0 %v45
  %v258 = vpop.f32.mrb[0].mxu0
  %v259 = vadd.f32 %v75, %v258
  %v260 = vpop.f32.mrb[0].mxu0
  %261 = vmatprep.mubr.f32.mxu0 0.0
  %262 = vmatmul.mubr.f32.gmra.mrb[0].mxu0 %v46
  %v263 = vpop.f32.mrb[0].mxu0
  %v264 = vadd.f32 %v75, %v263
  %v265 = vpop.f32.mrb[0].mxu0
  %266 = vmatprep.mubr.f32.mxu0 0.0
  %267 = vmatmul.mubr.f32.gmra.mrb[0].mxu0 %v47
  %v268 = vpop.f32.mrb[0].mxu0
  %v269 = vadd.f32 %v75, %v268
  %v270 = vpop.f32.mrb[0].mxu0
  %271 = vmatprep.mubr.f32.mxu0 0.0
  %272 = vmatmul.mubr.f32.gmra.mrb[0].mxu0 %v48
  %v273 = vpop.f32.mrb[0].mxu0
  %v274 = vadd.f32 %v75, %v273
  %v275 = vpop.f32.mrb[0].mxu0
  %276 = vmatprep.mubr.f32.mxu0 0.0
  %277 = vmatmul.mubr.f32.gmra.mrb[0].mxu0 %v49
  %v278 = vpop.f32.mrb[0].mxu0
  %v279 = vadd.f32 %v75, %v278
  %v280 = vpop.f32.mrb[0].mxu0
  %281 = vmatprep.mubr.f32.mxu0 0.0
  %282 = vmatmul.mubr.f32.gmra.mrb[0].mxu0 %v50
  %v283 = vpop.f32.mrb[0].mxu0
  %v284 = vadd.f32 %v75, %v283
  %v285 = vpop.f32.mrb[0].mxu0
  %286 = vmatprep.mubr.f32.mxu0 0.0
  %287 = vmatmul.mubr.f32.gmra.mrb[0].mxu0 %v51
  %v288 = vpop.f32.mrb[0].mxu0
  %v289 = vadd.f32 %v75, %v288
  %v290 = vpop.f32.mrb[0].mxu0
  %291 = vmatprep.mubr.f32.mxu0 0.0
  %292 = vmatmul.mubr.f32.gmra.mrb[0].mxu0 %v52
  %v293 = vpop.f32.mrb[0].mxu0
  %v294 = vadd.f32 %v75, %v293
  %v295 = vpop.f32.mrb[0].mxu0
  %296 = vmatprep.mubr.f32.mxu0 0.0
  %297 = vmatmul.mubr.f32.gmra.mrb[0].mxu0 %v53
  %v298 = vpop.f32.mrb[0].mxu0
  %v299 = vadd.f32 %v75, %v298
  %v300 = vpop.f32.mrb[0].mxu0
  %301 = vdwg.mxu0
  %302 = vst [vmem:[#allocation2] sm:$0xff] %v144
  %303 = vst [vmem:[#allocation2 + $0x8] sm:$0xff] %v149
  %304 = vst [vmem:[#allocation2 + $0x10] sm:$0xff] %v154
  %305 = vst [vmem:[#allocation2 + $0x18] sm:$0xff] %v159
  %306 = vst [vmem:[#allocation2 + $0x20] sm:$0xff] %v164
  %307 = vst [vmem:[#allocation2 + $0x28] sm:$0xff] %v169
  %308 = vst [vmem:[#allocation2 + $0x30] sm:$0xff] %v174
  %309 = vst [vmem:[#allocation2 + $0x38] sm:$0xff] %v179
  %310 = vst [vmem:[#allocation2 + $0x40] sm:$0xff] %v184
  %311 = vst [vmem:[#allocation2 + $0x48] sm:$0xff] %v189
  %312 = vst [vmem:[#allocation2 + $0x50] sm:$0xff] %v194
  %313 = vst [vmem:[#allocation2 + $0x58] sm:$0xff] %v199
  %314 = vst [vmem:[#allocation2 + $0x60] sm:$0xff] %v204
  %315 = vst [vmem:[#allocation2 + $0x68] sm:$0xff] %v209
  %316 = vst [vmem:[#allocation2 + $0x70] sm:$0xff] %v214
  %317 = vst [vmem:[#allocation2 + $0x78] sm:$0xff] %v219
  %318 = vst [vmem:[#allocation2 + $0x80] sm:$0xff] %v224
  %319 = vst [vmem:[#allocation2 + $0x88] sm:$0xff] %v229
  %320 = vst [vmem:[#allocation2 + $0x90] sm:$0xff] %v234
  %321 = vst [vmem:[#allocation2 + $0x98] sm:$0xff] %v239
  %322 = vst [vmem:[#allocation2 + $0xa0] sm:$0xff] %v244
  %323 = vst [vmem:[#allocation2 + $0xa8] sm:$0xff] %v249
  %324 = vst [vmem:[#allocation2 + $0xb0] sm:$0xff] %v254
  %325 = vst [vmem:[#allocation2 + $0xb8] sm:$0xff] %v259
  %326 = vst [vmem:[#allocation2 + $0xc0] sm:$0xff] %v264
  %327 = vst [vmem:[#allocation2 + $0xc8] sm:$0xff] %v269
  %328 = vst [vmem:[#allocation2 + $0xd0] sm:$0xff] %v274
  %329 = vst [vmem:[#allocation2 + $0xd8] sm:$0xff] %v279
  %330 = vst [vmem:[#allocation2 + $0xe0] sm:$0xff] %v284
  %331 = vst [vmem:[#allocation2 + $0xe8] sm:$0xff] %v289
  %332 = vst [vmem:[#allocation2 + $0xf0] sm:$0xff] %v294
  %333 = vst [vmem:[#allocation2 + $0xf8] sm:$0xff] %v299
  %v334 = vld [vmem:[%s4] sm:$0x1]
  %v335 = vld [vmem:[#allocation2] sm:$0xff]
  %v336 = vld [vmem:[#allocation2 + $0x8] sm:$0xff]
  %v337 = vld [vmem:[#allocation2 + $0x10] sm:$0xff]
  %v338 = vld [vmem:[#allocation2 + $0x18] sm:$0xff]
  %v339 = vtanh.pop %v335
  %v340 = vtanh.pop %v336
  %v341 = vtanh.pop %v337
  %v342 = vtanh.pop %v338
  %v343 = vpack.c.bf16 %v340, %v339
  %v344 = vpack.c.bf16 0.0, 0.0
  %v345 = vpack.c.bf16 %v342, %v341
  %v346 = vld [vmem:[%s2] sm:$0xff]
  %v347 = vld [vmem:[%s2 + $0x8] sm:$0xff]
  %v348 = vld [vmem:[%s2 + $0x10] sm:$0xff]
  %v349 = vld [vmem:[%s2 + $0x18] sm:$0xff]
  %v350 = vld [vmem:[%s2 + $0x20] sm:$0xff]
  %v351 = vld [vmem:[%s2 + $0x28] sm:$0xff]
  %v352 = vld [vmem:[%s2 + $0x30] sm:$0xff]
  %v353 = vld [vmem:[%s2 + $0x38] sm:$0xff]
  %v354 = vld [vmem:[%s2 + $0x40] sm:$0xff]
  %v355 = vld [vmem:[%s2 + $0x48] sm:$0xff]
  %v356 = vld [vmem:[%s2 + $0x50] sm:$0xff]
  %v357 = vld [vmem:[%s2 + $0x58] sm:$0xff]
  %v358 = vld [vmem:[%s2 + $0x60] sm:$0xff]
  %v359 = vld [vmem:[%s2 + $0x68] sm:$0xff]
  %v360 = vld [vmem:[%s2 + $0x70] sm:$0xff]
  %v361 = vld [vmem:[%s2 + $0x78] sm:$0xff]
  %v362 = vld [vmem:[%s2 + $0x80] sm:$0xff]
  %v363 = vld [vmem:[%s2 + $0x88] sm:$0xff]
  %v364 = vld [vmem:[%s2 + $0x90] sm:$0xff]
  %v365 = vld [vmem:[%s2 + $0x98] sm:$0xff]
  %v366 = vld [vmem:[%s2 + $0xa0] sm:$0xff]
  %v367 = vld [vmem:[%s2 + $0xa8] sm:$0xff]
  %v368 = vld [vmem:[%s2 + $0xb0] sm:$0xff]
  %v369 = vld [vmem:[%s2 + $0xb8] sm:$0xff]
  %v370 = vld [vmem:[%s2 + $0xc0] sm:$0xff]
  %v371 = vld [vmem:[%s2 + $0xc8] sm:$0xff]
  %v372 = vld [vmem:[%s2 + $0xd0] sm:$0xff]
  %v373 = vld [vmem:[%s2 + $0xd8] sm:$0xff]
  %v374 = vld [vmem:[%s2 + $0xe0] sm:$0xff]
  %v375 = vld [vmem:[%s2 + $0xe8] sm:$0xff]
  %v376 = vld [vmem:[%s2 + $0xf0] sm:$0xff]
  %v377 = vld [vmem:[%s2 + $0xf8] sm:$0xff]
  %v410 = vunpack.c.l.b16 %v346
  %v411 = vunpack.c.h.b16 %v346
  %v412 = vunpack.c.l.b16 %v347
  %v413 = vunpack.c.h.b16 %v347
  %v414 = vunpack.c.l.b16 %v348
  %v415 = vunpack.c.h.b16 %v348
  %v416 = vunpack.c.l.b16 %v349
  %v417 = vunpack.c.h.b16 %v349
  %v418 = vunpack.c.l.b16 %v350
  %v419 = vunpack.c.h.b16 %v350
  %v420 = vunpack.c.l.b16 %v351
  %v421 = vunpack.c.h.b16 %v351
  %v422 = vunpack.c.l.b16 %v352
  %v423 = vunpack.c.h.b16 %v352
  %v424 = vunpack.c.l.b16 %v353
  %v425 = vunpack.c.h.b16 %v353
  %v426 = vunpack.c.l.b16 %v354
  %v427 = vunpack.c.h.b16 %v354
  %v428 = vunpack.c.l.b16 %v355
  %v429 = vunpack.c.h.b16 %v355
  %v430 = vunpack.c.l.b16 %v356
  %v431 = vunpack.c.h.b16 %v356
  %v432 = vunpack.c.l.b16 %v357
  %v433 = vunpack.c.h.b16 %v357
  %v434 = vunpack.c.l.b16 %v358
  %v435 = vunpack.c.h.b16 %v358
  %v436 = vunpack.c.l.b16 %v359
  %v437 = vunpack.c.h.b16 %v359
  %v438 = vunpack.c.l.b16 %v360
  %v439 = vunpack.c.h.b16 %v360
  %v440 = vunpack.c.l.b16 %v361
  %v441 = vunpack.c.h.b16 %v361
  %v442 = vunpack.c.l.b16 %v362
  %v443 = vunpack.c.h.b16 %v362
  %v444 = vunpack.c.l.b16 %v363
  %v445 = vunpack.c.h.b16 %v363
  %v446 = vunpack.c.l.b16 %v364
  %v447 = vunpack.c.h.b16 %v364
  %v448 = vunpack.c.l.b16 %v365
  %v449 = vunpack.c.h.b16 %v365
  %v450 = vunpack.c.l.b16 %v366
  %v451 = vunpack.c.h.b16 %v366
  %v452 = vunpack.c.l.b16 %v367
  %v453 = vunpack.c.h.b16 %v367
  %v454 = vunpack.c.l.b16 %v368
  %v455 = vunpack.c.h.b16 %v368
  %v456 = vunpack.c.l.b16 %v369
  %v457 = vunpack.c.h.b16 %v369
  %v458 = vunpack.c.l.b16 %v370
  %v459 = vunpack.c.h.b16 %v370
  %v460 = vunpack.c.l.b16 %v371
  %v461 = vunpack.c.h.b16 %v371
  %v462 = vunpack.c.l.b16 %v372
  %v463 = vunpack.c.h.b16 %v372
  %v464 = vunpack.c.l.b16 %v373
  %v465 = vunpack.c.h.b16 %v373
  %v466 = vunpack.c.l.b16 %v374
  %v467 = vunpack.c.h.b16 %v374
  %v468 = vunpack.c.l.b16 %v375
  %v469 = vunpack.c.h.b16 %v375
  %v470 = vunpack.c.l.b16 %v376
  %v471 = vunpack.c.h.b16 %v376
  %v472 = vunpack.c.l.b16 %v377
  %v473 = vunpack.c.h.b16 %v377
  %v474 = vpack.c.b16 %v412, %v410
  %v475 = vpack.c.b16 %v413, %v411
  %v476 = vpack.c.b16 %v416, %v414
  %v477 = vpack.c.b16 %v417, %v415
  %v478 = vpack.c.b16 %v420, %v418
  %v479 = vpack.c.b16 %v421, %v419
  %v480 = vpack.c.b16 %v424, %v422
  %v481 = vpack.c.b16 %v425, %v423
  %v482 = vpack.c.b16 %v428, %v426
  %v483 = vpack.c.b16 %v429, %v427
  %v484 = vpack.c.b16 %v432, %v430
  %v485 = vpack.c.b16 %v433, %v431
  %v486 = vpack.c.b16 %v436, %v434
  %v487 = vpack.c.b16 %v437, %v435
  %v488 = vpack.c.b16 %v440, %v438
  %v489 = vpack.c.b16 %v441, %v439
  %v490 = vpack.c.b16 %v444, %v442
  %v491 = vpack.c.b16 %v445, %v443
  %v492 = vpack.c.b16 %v448, %v446
  %v493 = vpack.c.b16 %v449, %v447
  %v494 = vpack.c.b16 %v452, %v450
  %v495 = vpack.c.b16 %v453, %v451
  %v496 = vpack.c.b16 %v456, %v454
  %v497 = vpack.c.b16 %v457, %v455
  %v498 = vpack.c.b16 %v460, %v458
  %v499 = vpack.c.b16 %v461, %v459
  %v500 = vpack.c.b16 %v464, %v462
  %v501 = vpack.c.b16 %v465, %v463
  %v502 = vpack.c.b16 %v468, %v466
  %v503 = vpack.c.b16 %v469, %v467
  %v504 = vpack.c.b16 %v472, %v470
  %v505 = vpack.c.b16 %v473, %v471
  %538 = vmatprep.subr.bf16.mxu0 %v475
  %539 = vmatpush1.bf16.msra.mxu0 %v474
  %540 = vmatprep.subr.bf16.mxu0 %v477
  %541 = vmatpush1.bf16.msra.mxu0 %v476
  %542 = vmatprep.subr.bf16.mxu0 %v479
  %543 = vmatpush1.bf16.msra.mxu0 %v478
  %544 = vmatprep.subr.bf16.mxu0 %v481
  %545 = vmatpush1.bf16.msra.mxu0 %v480
  %546 = vmatprep.subr.bf16.mxu0 %v483
  %547 = vmatpush1.bf16.msra.mxu0 %v482
  %548 = vmatprep.subr.bf16.mxu0 %v485
  %549 = vmatpush1.bf16.msra.mxu0 %v484
  %550 = vmatprep.subr.bf16.mxu0 %v487
  %551 = vmatpush1.bf16.msra.mxu0 %v486
  %552 = vmatprep.subr.bf16.mxu0 %v489
  %553 = vmatpush1.bf16.msra.mxu0 %v488
  %554 = vmatprep.subr.bf16.mxu0 %v491
  %555 = vmatpush1.bf16.msra.mxu0 %v490
  %556 = vmatprep.subr.bf16.mxu0 %v493
  %557 = vmatpush1.bf16.msra.mxu0 %v492
  %558 = vmatprep.subr.bf16.mxu0 %v495
  %559 = vmatpush1.bf16.msra.mxu0 %v494
  %560 = vmatprep.subr.bf16.mxu0 %v497
  %561 = vmatpush1.bf16.msra.mxu0 %v496
  %562 = vmatprep.subr.bf16.mxu0 %v499
  %563 = vmatpush1.bf16.msra.mxu0 %v498
  %564 = vmatprep.subr.bf16.mxu0 %v501
  %565 = vmatpush1.bf16.msra.mxu0 %v500
  %566 = vmatprep.subr.bf16.mxu0 %v503
  %567 = vmatpush1.bf16.msra.mxu0 %v502
  %568 = vmatprep.subr.bf16.mxu0 %v505
  %569 = vmatpush1.bf16.msra.mxu0 %v504
  %570 = vmatprep.mubr.bf16.mxu0 %v344
  %571 = vmatmul.mubr.bf16.gmra.mrb[0].mxu0 %v343
  %v572 = vpop.f32.mrb[0].mxu0
  %v573 = vadd.f32 0.0, %v572
  %v574 = vpop.f32.mrb[0].mxu0
  %v575 = vadd.f32 0.0, %v574
  %v576 = vpop.f32.mrb[0].mxu0
  %v577 = vadd.f32 0.0, %v576
  %v578 = vpop.f32.mrb[0].mxu0
  %v579 = vadd.f32 0.0, %v578
  %580 = vmatprep.mubr.bf16.mxu0 %v344
  %581 = vmatmul.mubr.bf16.gmra.mrb[0].mxu0 %v345
  %v582 = vpop.f32.mrb[0].mxu0
  %v583 = vadd.f32 0.0, %v582
  %v584 = vpop.f32.mrb[0].mxu0
  %v585 = vadd.f32 0.0, %v584
  %v586 = vpop.f32.mrb[0].mxu0
  %v587 = vadd.f32 0.0, %v586
  %v588 = vpop.f32.mrb[0].mxu0
  %v589 = vadd.f32 0.0, %v588
  %590 = vdwg.mxu0
  %v592 = vlaneseq
  %v593 = vshrl.u32 %v592, 7
  %v594 = vsub.s32 0, %v593
  %v595 = vrot.slane %v334, %v594
  %v597 = vadd.f32 %v575, %v595
  %v598 = vadd.f32 %v579, %v595
  %v599 = vadd.f32 %v585, %v595
  %v600 = vadd.f32 %v589, %v595
  %v601 = vtanh.pop %v597
  %v602 = vtanh.pop %v598
  %v603 = vtanh.pop %v599
  %v604 = vtanh.pop %v600
  %605 = vst [vmem:[%s5] sm:$0xff] %v601
  %606 = vst [vmem:[%s5 + $0x8] sm:$0xff] %v602
  %607 = vst [vmem:[%s5 + $0x10] sm:$0xff] %v603
  %608 = vst [vmem:[%s5 + $0x18] sm:$0xff] %v604
  %v609 = vld [vmem:[#allocation2 + $0x20] sm:$0xff]
  %v610 = vld [vmem:[#allocation2 + $0x28] sm:$0xff]
  %v611 = vld [vmem:[#allocation2 + $0x30] sm:$0xff]
  %v612 = vld [vmem:[#allocation2 + $0x38] sm:$0xff]
  %v613 = vadd.f32 %v573, %v609
  %v614 = vadd.f32 %v577, %v610
  %v615 = vadd.f32 %v583, %v611
  %v616 = vadd.f32 %v587, %v612
  %v617 = vtanh.pop %v613
  %v618 = vtanh.pop %v614
  %v619 = vtanh.pop %v615
  %v620 = vtanh.pop %v616
  %v621 = vpack.c.bf16 %v618, %v617
  %v622 = vpack.c.bf16 %v602, %v601
  %v623 = vpack.c.bf16 %v620, %v619
  %v624 = vpack.c.bf16 %v604, %v603
  %v625 = vld [vmem:[%s2] sm:$0xff]
  %v626 = vld [vmem:[%s2 + $0x8] sm:$0xff]
  %v627 = vld [vmem:[%s2 + $0x10] sm:$0xff]
  %v628 = vld [vmem:[%s2 + $0x18] sm:$0xff]
  %v629 = vld [vmem:[%s2 + $0x20] sm:$0xff]
  %v630 = vld [vmem:[%s2 + $0x28] sm:$0xff]
  %v631 = vld [vmem:[%s2 + $0x30] sm:$0xff]
  %v632 = vld [vmem:[%s2 + $0x38] sm:$0xff]
  %v633 = vld [vmem:[%s2 + $0x40] sm:$0xff]
  %v634 = vld [vmem:[%s2 + $0x48] sm:$0xff]
  %v635 = vld [vmem:[%s2 + $0x50] sm:$0xff]
  %v636 = vld [vmem:[%s2 + $0x58] sm:$0xff]
  %v637 = vld [vmem:[%s2 + $0x60] sm:$0xff]
  %v638 = vld [vmem:[%s2 + $0x68] sm:$0xff]
  %v639 = vld [vmem:[%s2 + $0x70] sm:$0xff]
  %v640 = vld [vmem:[%s2 + $0x78] sm:$0xff]
  %v641 = vld [vmem:[%s2 + $0x80] sm:$0xff]
  %v642 = vld [vmem:[%s2 + $0x88] sm:$0xff]
  %v643 = vld [vmem:[%s2 + $0x90] sm:$0xff]
  %v644 = vld [vmem:[%s2 + $0x98] sm:$0xff]
  %v645 = vld [vmem:[%s2 + $0xa0] sm:$0xff]
  %v646 = vld [vmem:[%s2 + $0xa8] sm:$0xff]
  %v647 = vld [vmem:[%s2 + $0xb0] sm:$0xff]
  %v648 = vld [vmem:[%s2 + $0xb8] sm:$0xff]
  %v649 = vld [vmem:[%s2 + $0xc0] sm:$0xff]
  %v650 = vld [vmem:[%s2 + $0xc8] sm:$0xff]
  %v651 = vld [vmem:[%s2 + $0xd0] sm:$0xff]
  %v652 = vld [vmem:[%s2 + $0xd8] sm:$0xff]
  %v653 = vld [vmem:[%s2 + $0xe0] sm:$0xff]
  %v654 = vld [vmem:[%s2 + $0xe8] sm:$0xff]
  %v655 = vld [vmem:[%s2 + $0xf0] sm:$0xff]
  %v656 = vld [vmem:[%s2 + $0xf8] sm:$0xff]
  %v689 = vunpack.c.l.b16 %v625
  %v690 = vunpack.c.h.b16 %v625
  %v691 = vunpack.c.l.b16 %v626
  %v692 = vunpack.c.h.b16 %v626
  %v693 = vunpack.c.l.b16 %v627
  %v694 = vunpack.c.h.b16 %v627
  %v695 = vunpack.c.l.b16 %v628
  %v696 = vunpack.c.h.b16 %v628
  %v697 = vunpack.c.l.b16 %v629
  %v698 = vunpack.c.h.b16 %v629
  %v699 = vunpack.c.l.b16 %v630
  %v700 = vunpack.c.h.b16 %v630
  %v701 = vunpack.c.l.b16 %v631
  %v702 = vunpack.c.h.b16 %v631
  %v703 = vunpack.c.l.b16 %v632
  %v704 = vunpack.c.h.b16 %v632
  %v705 = vunpack.c.l.b16 %v633
  %v706 = vunpack.c.h.b16 %v633
  %v707 = vunpack.c.l.b16 %v634
  %v708 = vunpack.c.h.b16 %v634
  %v709 = vunpack.c.l.b16 %v635
  %v710 = vunpack.c.h.b16 %v635
  %v711 = vunpack.c.l.b16 %v636
  %v712 = vunpack.c.h.b16 %v636
  %v713 = vunpack.c.l.b16 %v637
  %v714 = vunpack.c.h.b16 %v637
  %v715 = vunpack.c.l.b16 %v638
  %v716 = vunpack.c.h.b16 %v638
  %v717 = vunpack.c.l.b16 %v639
  %v718 = vunpack.c.h.b16 %v639
  %v719 = vunpack.c.l.b16 %v640
  %v720 = vunpack.c.h.b16 %v640
  %v721 = vunpack.c.l.b16 %v641
  %v722 = vunpack.c.h.b16 %v641
  %v723 = vunpack.c.l.b16 %v642
  %v724 = vunpack.c.h.b16 %v642
  %v725 = vunpack.c.l.b16 %v643
  %v726 = vunpack.c.h.b16 %v643
  %v727 = vunpack.c.l.b16 %v644
  %v728 = vunpack.c.h.b16 %v644
  %v729 = vunpack.c.l.b16 %v645
  %v730 = vunpack.c.h.b16 %v645
  %v731 = vunpack.c.l.b16 %v646
  %v732 = vunpack.c.h.b16 %v646
  %v733 = vunpack.c.l.b16 %v647
  %v734 = vunpack.c.h.b16 %v647
  %v735 = vunpack.c.l.b16 %v648
  %v736 = vunpack.c.h.b16 %v648
  %v737 = vunpack.c.l.b16 %v649
  %v738 = vunpack.c.h.b16 %v649
  %v739 = vunpack.c.l.b16 %v650
  %v740 = vunpack.c.h.b16 %v650
  %v741 = vunpack.c.l.b16 %v651
  %v742 = vunpack.c.h.b16 %v651
  %v743 = vunpack.c.l.b16 %v652
  %v744 = vunpack.c.h.b16 %v652
  %v745 = vunpack.c.l.b16 %v653
  %v746 = vunpack.c.h.b16 %v653
  %v747 = vunpack.c.l.b16 %v654
  %v748 = vunpack.c.h.b16 %v654
  %v749 = vunpack.c.l.b16 %v655
  %v750 = vunpack.c.h.b16 %v655
  %v751 = vunpack.c.l.b16 %v656
  %v752 = vunpack.c.h.b16 %v656
  %v753 = vpack.c.b16 %v691, %v689
  %v754 = vpack.c.b16 %v692, %v690
  %v755 = vpack.c.b16 %v695, %v693
  %v756 = vpack.c.b16 %v696, %v694
  %v757 = vpack.c.b16 %v699, %v697
  %v758 = vpack.c.b16 %v700, %v698
  %v759 = vpack.c.b16 %v703, %v701
  %v760 = vpack.c.b16 %v704, %v702
  %v761 = vpack.c.b16 %v707, %v705
  %v762 = vpack.c.b16 %v708, %v706
  %v763 = vpack.c.b16 %v711, %v709
  %v764 = vpack.c.b16 %v712, %v710
  %v765 = vpack.c.b16 %v715, %v713
  %v766 = vpack.c.b16 %v716, %v714
  %v767 = vpack.c.b16 %v719, %v717
  %v768 = vpack.c.b16 %v720, %v718
  %v769 = vpack.c.b16 %v723, %v721
  %v770 = vpack.c.b16 %v724, %v722
  %v771 = vpack.c.b16 %v727, %v725
  %v772 = vpack.c.b16 %v728, %v726
  %v773 = vpack.c.b16 %v731, %v729
  %v774 = vpack.c.b16 %v732, %v730
  %v775 = vpack.c.b16 %v735, %v733
  %v776 = vpack.c.b16 %v736, %v734
  %v777 = vpack.c.b16 %v739, %v737
  %v778 = vpack.c.b16 %v740, %v738
  %v779 = vpack.c.b16 %v743, %v741
  %v780 = vpack.c.b16 %v744, %v742
  %v781 = vpack.c.b16 %v747, %v745
  %v782 = vpack.c.b16 %v748, %v746
  %v783 = vpack.c.b16 %v751, %v749
  %v784 = vpack.c.b16 %v752, %v750
  %817 = vmatprep.subr.bf16.mxu0 %v754
  %818 = vmatpush1.bf16.msra.mxu0 %v753
  %819 = vmatprep.subr.bf16.mxu0 %v756
  %820 = vmatpush1.bf16.msra.mxu0 %v755
  %821 = vmatprep.subr.bf16.mxu0 %v758
  %822 = vmatpush1.bf16.msra.mxu0 %v757
  %823 = vmatprep.subr.bf16.mxu0 %v760
  %824 = vmatpush1.bf16.msra.mxu0 %v759
  %825 = vmatprep.subr.bf16.mxu0 %v762
  %826 = vmatpush1.bf16.msra.mxu0 %v761
  %827 = vmatprep.subr.bf16.mxu0 %v764
  %828 = vmatpush1.bf16.msra.mxu0 %v763
  %829 = vmatprep.subr.bf16.mxu0 %v766
  %830 = vmatpush1.bf16.msra.mxu0 %v765
  %831 = vmatprep.subr.bf16.mxu0 %v768
  %832 = vmatpush1.bf16.msra.mxu0 %v767
  %833 = vmatprep.subr.bf16.mxu0 %v770
  %834 = vmatpush1.bf16.msra.mxu0 %v769
  %835 = vmatprep.subr.bf16.mxu0 %v772
  %836 = vmatpush1.bf16.msra.mxu0 %v771
  %837 = vmatprep.subr.bf16.mxu0 %v774
  %838 = vmatpush1.bf16.msra.mxu0 %v773
  %839 = vmatprep.subr.bf16.mxu0 %v776
  %840 = vmatpush1.bf16.msra.mxu0 %v775
  %841 = vmatprep.subr.bf16.mxu0 %v778
  %842 = vmatpush1.bf16.msra.mxu0 %v777
  %843 = vmatprep.subr.bf16.mxu0 %v780
  %844 = vmatpush1.bf16.msra.mxu0 %v779
  %845 = vmatprep.subr.bf16.mxu0 %v782
  %846 = vmatpush1.bf16.msra.mxu0 %v781
  %847 = vmatprep.subr.bf16.mxu0 %v784
  %848 = vmatpush1.bf16.msra.mxu0 %v783
  %849 = vmatprep.mubr.bf16.mxu0 %v622
  %850 = vmatmul.mubr.bf16.gmra.mrb[0].mxu0 %v621
  %v851 = vpop.f32.mrb[0].mxu0
  %v852 = vadd.f32 0.0, %v851
  %v853 = vpop.f32.mrb[0].mxu0
  %v854 = vadd.f32 0.0, %v853
  %v855 = vpop.f32.mrb[0].mxu0
  %v856 = vadd.f32 0.0, %v855
  %v857 = vpop.f32.mrb[0].mxu0
  %v858 = vadd.f32 0.0, %v857
  %859 = vmatprep.mubr.bf16.mxu0 %v624
  %860 = vmatmul.mubr.bf16.gmra.mrb[0].mxu0 %v623
  %v861 = vpop.f32.mrb[0].mxu0
  %v862 = vadd.f32 0.0, %v861
  %v863 = vpop.f32.mrb[0].mxu0
  %v864 = vadd.f32 0.0, %v863
  %v865 = vpop.f32.mrb[0].mxu0
  %v866 = vadd.f32 0.0, %v865
  %v867 = vpop.f32.mrb[0].mxu0
  %v868 = vadd.f32 0.0, %v867
  %869 = vdwg.mxu0
  %v870 = vadd.f32 %v854, %v595
  %v871 = vadd.f32 %v858, %v595
  %v872 = vadd.f32 %v864, %v595
  %v873 = vadd.f32 %v868, %v595
  %v874 = vtanh.pop %v870
  %v875 = vtanh.pop %v871
  %v876 = vtanh.pop %v872
  %v877 = vtanh.pop %v873
  %878 = vst [vmem:[%s5 + $0x20] sm:$0xff] %v874
  %879 = vst [vmem:[%s5 + $0x28] sm:$0xff] %v875
  %880 = vst [vmem:[%s5 + $0x30] sm:$0xff] %v876
  %881 = vst [vmem:[%s5 + $0x38] sm:$0xff] %v877
  %v882 = vld [vmem:[#allocation2 + $0x40] sm:$0xff]
  %v883 = vld [vmem:[#allocation2 + $0x48] sm:$0xff]
  %v884 = vld [vmem:[#allocation2 + $0x50] sm:$0xff]
  %v885 = vld [vmem:[#allocation2 + $0x58] sm:$0xff]
  %v886 = vadd.f32 %v852, %v882
  %v887 = vadd.f32 %v856, %v883
  %v888 = vadd.f32 %v862, %v884
  %v889 = vadd.f32 %v866, %v885
  %v890 = vtanh.pop %v886
  %v891 = vtanh.pop %v887
  %v892 = vtanh.pop %v888
  %v893 = vtanh.pop %v889
  %v894 = vpack.c.bf16 %v891, %v890
  %v895 = vpack.c.bf16 %v875, %v874
  %v896 = vpack.c.bf16 %v893, %v892
  %v897 = vpack.c.bf16 %v877, %v876
  %v898 = vld [vmem:[%s2] sm:$0xff]
  %v899 = vld [vmem:[%s2 + $0x8] sm:$0xff]
  %v900 = vld [vmem:[%s2 + $0x10] sm:$0xff]
  %v901 = vld [vmem:[%s2 + $0x18] sm:$0xff]
  %v902 = vld [vmem:[%s2 + $0x20] sm:$0xff]
  %v903 = vld [vmem:[%s2 + $0x28] sm:$0xff]
  %v904 = vld [vmem:[%s2 + $0x30] sm:$0xff]
  %v905 = vld [vmem:[%s2 + $0x38] sm:$0xff]
  %v906 = vld [vmem:[%s2 + $0x40] sm:$0xff]
  %v907 = vld [vmem:[%s2 + $0x48] sm:$0xff]
  %v908 = vld [vmem:[%s2 + $0x50] sm:$0xff]
  %v909 = vld [vmem:[%s2 + $0x58] sm:$0xff]
  %v910 = vld [vmem:[%s2 + $0x60] sm:$0xff]
  %v911 = vld [vmem:[%s2 + $0x68] sm:$0xff]
  %v912 = vld [vmem:[%s2 + $0x70] sm:$0xff]
  %v913 = vld [vmem:[%s2 + $0x78] sm:$0xff]
  %v914 = vld [vmem:[%s2 + $0x80] sm:$0xff]
  %v915 = vld [vmem:[%s2 + $0x88] sm:$0xff]
  %v916 = vld [vmem:[%s2 + $0x90] sm:$0xff]
  %v917 = vld [vmem:[%s2 + $0x98] sm:$0xff]
  %v918 = vld [vmem:[%s2 + $0xa0] sm:$0xff]
  %v919 = vld [vmem:[%s2 + $0xa8] sm:$0xff]
  %v920 = vld [vmem:[%s2 + $0xb0] sm:$0xff]
  %v921 = vld [vmem:[%s2 + $0xb8] sm:$0xff]
  %v922 = vld [vmem:[%s2 + $0xc0] sm:$0xff]
  %v923 = vld [vmem:[%s2 + $0xc8] sm:$0xff]
  %v924 = vld [vmem:[%s2 + $0xd0] sm:$0xff]
  %v925 = vld [vmem:[%s2 + $0xd8] sm:$0xff]
  %v926 = vld [vmem:[%s2 + $0xe0] sm:$0xff]
  %v927 = vld [vmem:[%s2 + $0xe8] sm:$0xff]
  %v928 = vld [vmem:[%s2 + $0xf0] sm:$0xff]
  %v929 = vld [vmem:[%s2 + $0xf8] sm:$0xff]
  %v962 = vunpack.c.l.b16 %v898
  %v963 = vunpack.c.h.b16 %v898
  %v964 = vunpack.c.l.b16 %v899
  %v965 = vunpack.c.h.b16 %v899
  %v966 = vunpack.c.l.b16 %v900
  %v967 = vunpack.c.h.b16 %v900
  %v968 = vunpack.c.l.b16 %v901
  %v969 = vunpack.c.h.b16 %v901
  %v970 = vunpack.c.l.b16 %v902
  %v971 = vunpack.c.h.b16 %v902
  %v972 = vunpack.c.l.b16 %v903
  %v973 = vunpack.c.h.b16 %v903
  %v974 = vunpack.c.l.b16 %v904
  %v975 = vunpack.c.h.b16 %v904
  %v976 = vunpack.c.l.b16 %v905
  %v977 = vunpack.c.h.b16 %v905
  %v978 = vunpack.c.l.b16 %v906
  %v979 = vunpack.c.h.b16 %v906
  %v980 = vunpack.c.l.b16 %v907
  %v981 = vunpack.c.h.b16 %v907
  %v982 = vunpack.c.l.b16 %v908
  %v983 = vunpack.c.h.b16 %v908
  %v984 = vunpack.c.l.b16 %v909
  %v985 = vunpack.c.h.b16 %v909
  %v986 = vunpack.c.l.b16 %v910
  %v987 = vunpack.c.h.b16 %v910
  %v988 = vunpack.c.l.b16 %v911
  %v989 = vunpack.c.h.b16 %v911
  %v990 = vunpack.c.l.b16 %v912
  %v991 = vunpack.c.h.b16 %v912
  %v992 = vunpack.c.l.b16 %v913
  %v993 = vunpack.c.h.b16 %v913
  %v994 = vunpack.c.l.b16 %v914
  %v995 = vunpack.c.h.b16 %v914
  %v996 = vunpack.c.l.b16 %v915
  %v997 = vunpack.c.h.b16 %v915
  %v998 = vunpack.c.l.b16 %v916
  %v999 = vunpack.c.h.b16 %v916
  %v1000 = vunpack.c.l.b16 %v917
  %v1001 = vunpack.c.h.b16 %v917
  %v1002 = vunpack.c.l.b16 %v918
  %v1003 = vunpack.c.h.b16 %v918
  %v1004 = vunpack.c.l.b16 %v919
  %v1005 = vunpack.c.h.b16 %v919
  %v1006 = vunpack.c.l.b16 %v920
  %v1007 = vunpack.c.h.b16 %v920
  %v1008 = vunpack.c.l.b16 %v921
  %v1009 = vunpack.c.h.b16 %v921
  %v1010 = vunpack.c.l.b16 %v922
  %v1011 = vunpack.c.h.b16 %v922
  %v1012 = vunpack.c.l.b16 %v923
  %v1013 = vunpack.c.h.b16 %v923
  %v1014 = vunpack.c.l.b16 %v924
  %v1015 = vunpack.c.h.b16 %v924
  %v1016 = vunpack.c.l.b16 %v925
  %v1017 = vunpack.c.h.b16 %v925
  %v1018 = vunpack.c.l.b16 %v926
  %v1019 = vunpack.c.h.b16 %v926
  %v1020 = vunpack.c.l.b16 %v927
  %v1021 = vunpack.c.h.b16 %v927
  %v1022 = vunpack.c.l.b16 %v928
  %v1023 = vunpack.c.h.b16 %v928
  %v1024 = vunpack.c.l.b16 %v929
  %v1025 = vunpack.c.h.b16 %v929
  %v1026 = vpack.c.b16 %v964, %v962
  %v1027 = vpack.c.b16 %v965, %v963
  %v1028 = vpack.c.b16 %v968, %v966
  %v1029 = vpack.c.b16 %v969, %v967
  %v1030 = vpack.c.b16 %v972, %v970
  %v1031 = vpack.c.b16 %v973, %v971
  %v1032 = vpack.c.b16 %v976, %v974
  %v1033 = vpack.c.b16 %v977, %v975
  %v1034 = vpack.c.b16 %v980, %v978
  %v1035 = vpack.c.b16 %v981, %v979
  %v1036 = vpack.c.b16 %v984, %v982
  %v1037 = vpack.c.b16 %v985, %v983
  %v1038 = vpack.c.b16 %v988, %v986
  %v1039 = vpack.c.b16 %v989, %v987
  %v1040 = vpack.c.b16 %v992, %v990
  %v1041 = vpack.c.b16 %v993, %v991
  %v1042 = vpack.c.b16 %v996, %v994
  %v1043 = vpack.c.b16 %v997, %v995
  %v1044 = vpack.c.b16 %v1000, %v998
  %v1045 = vpack.c.b16 %v1001, %v999
  %v1046 = vpack.c.b16 %v1004, %v1002
  %v1047 = vpack.c.b16 %v1005, %v1003
  %v1048 = vpack.c.b16 %v1008, %v1006
  %v1049 = vpack.c.b16 %v1009, %v1007
  %v1050 = vpack.c.b16 %v1012, %v1010
  %v1051 = vpack.c.b16 %v1013, %v1011
  %v1052 = vpack.c.b16 %v1016, %v1014
  %v1053 = vpack.c.b16 %v1017, %v1015
  %v1054 = vpack.c.b16 %v1020, %v1018
  %v1055 = vpack.c.b16 %v1021, %v1019
  %v1056 = vpack.c.b16 %v1024, %v1022
  %v1057 = vpack.c.b16 %v1025, %v1023
  %1090 = vmatprep.subr.bf16.mxu0 %v1027
  %1091 = vmatpush1.bf16.msra.mxu0 %v1026
  %1092 = vmatprep.subr.bf16.mxu0 %v1029
  %1093 = vmatpush1.bf16.msra.mxu0 %v1028
  %1094 = vmatprep.subr.bf16.mxu0 %v1031
  %1095 = vmatpush1.bf16.msra.mxu0 %v1030
  %1096 = vmatprep.subr.bf16.mxu0 %v1033
  %1097 = vmatpush1.bf16.msra.mxu0 %v1032
  %1098 = vmatprep.subr.bf16.mxu0 %v1035
  %1099 = vmatpush1.bf16.msra.mxu0 %v1034
  %1100 = vmatprep.subr.bf16.mxu0 %v1037
  %1101 = vmatpush1.bf16.msra.mxu0 %v1036
  %1102 = vmatprep.subr.bf16.mxu0 %v1039
  %1103 = vmatpush1.bf16.msra.mxu0 %v1038
  %1104 = vmatprep.subr.bf16.mxu0 %v1041
  %1105 = vmatpush1.bf16.msra.mxu0 %v1040
  %1106 = vmatprep.subr.bf16.mxu0 %v1043
  %1107 = vmatpush1.bf16.msra.mxu0 %v1042
  %1108 = vmatprep.subr.bf16.mxu0 %v1045
  %1109 = vmatpush1.bf16.msra.mxu0 %v1044
  %1110 = vmatprep.subr.bf16.mxu0 %v1047
  %1111 = vmatpush1.bf16.msra.mxu0 %v1046
  %1112 = vmatprep.subr.bf16.mxu0 %v1049
  %1113 = vmatpush1.bf16.msra.mxu0 %v1048
  %1114 = vmatprep.subr.bf16.mxu0 %v1051
  %1115 = vmatpush1.bf16.msra.mxu0 %v1050
  %1116 = vmatprep.subr.bf16.mxu0 %v1053
  %1117 = vmatpush1.bf16.msra.mxu0 %v1052
  %1118 = vmatprep.subr.bf16.mxu0 %v1055
  %1119 = vmatpush1.bf16.msra.mxu0 %v1054
  %1120 = vmatprep.subr.bf16.mxu0 %v1057
  %1121 = vmatpush1.bf16.msra.mxu0 %v1056
  %1122 = vmatprep.mubr.bf16.mxu0 %v895
  %1123 = vmatmul.mubr.bf16.gmra.mrb[0].mxu0 %v894
  %v1124 = vpop.f32.mrb[0].mxu0
  %v1125 = vadd.f32 0.0, %v1124
  %v1126 = vpop.f32.mrb[0].mxu0
  %v1127 = vadd.f32 0.0, %v1126
  %v1128 = vpop.f32.mrb[0].mxu0
  %v1129 = vadd.f32 0.0, %v1128
  %v1130 = vpop.f32.mrb[0].mxu0
  %v1131 = vadd.f32 0.0, %v1130
  %1132 = vmatprep.mubr.bf16.mxu0 %v897
  %1133 = vmatmul.mubr.bf16.gmra.mrb[0].mxu0 %v896
  %v1134 = vpop.f32.mrb[0].mxu0
  %v1135 = vadd.f32 0.0, %v1134
  %v1136 = vpop.f32.mrb[0].mxu0
  %v1137 = vadd.f32 0.0, %v1136
  %v1138 = vpop.f32.mrb[0].mxu0
  %v1139 = vadd.f32 0.0, %v1138
  %v1140 = vpop.f32.mrb[0].mxu0
  %v1141 = vadd.f32 0.0, %v1140
  %1142 = vdwg.mxu0
  %v1143 = vadd.f32 %v1127, %v595
  %v1144 = vadd.f32 %v1131, %v595
  %v1145 = vadd.f32 %v1137, %v595
  %v1146 = vadd.f32 %v1141, %v595
  %v1147 = vtanh.pop %v1143
  %v1148 = vtanh.pop %v1144
  %v1149 = vtanh.pop %v1145
  %v1150 = vtanh.pop %v1146
  %1151 = vst [vmem:[%s5 + $0x40] sm:$0xff] %v1147
  %1152 = vst [vmem:[%s5 + $0x48] sm:$0xff] %v1148
  %1153 = vst [vmem:[%s5 + $0x50] sm:$0xff] %v1149
  %1154 = vst [vmem:[%s5 + $0x58] sm:$0xff] %v1150
  %v1155 = vld [vmem:[#allocation2 + $0x60] sm:$0xff]
  %v1156 = vld [vmem:[#allocation2 + $0x68] sm:$0xff]
  %v1157 = vld [vmem:[#allocation2 + $0x70] sm:$0xff]
  %v1158 = vld [vmem:[#allocation2 + $0x78] sm:$0xff]
  %v1159 = vadd.f32 %v1125, %v1155
  %v1160 = vadd.f32 %v1129, %v1156
  %v1161 = vadd.f32 %v1135, %v1157
  %v1162 = vadd.f32 %v1139, %v1158
  %v1163 = vtanh.pop %v1159
  %v1164 = vtanh.pop %v1160
  %v1165 = vtanh.pop %v1161
  %v1166 = vtanh.pop %v1162
  %v1167 = vpack.c.bf16 %v1164, %v1163
  %v1168 = vpack.c.bf16 %v1148, %v1147
  %v1169 = vpack.c.bf16 %v1166, %v1165
  %v1170 = vpack.c.bf16 %v1150, %v1149
  %v1171 = vld [vmem:[%s2] sm:$0xff]
  %v1172 = vld [vmem:[%s2 + $0x8] sm:$0xff]
  %v1173 = vld [vmem:[%s2 + $0x10] sm:$0xff]
  %v1174 = vld [vmem:[%s2 + $0x18] sm:$0xff]
  %v1175 = vld [vmem:[%s2 + $0x20] sm:$0xff]
  %v1176 = vld [vmem:[%s2 + $0x28] sm:$0xff]
  %v1177 = vld [vmem:[%s2 + $0x30] sm:$0xff]
  %v1178 = vld [vmem:[%s2 + $0x38] sm:$0xff]
  %v1179 = vld [vmem:[%s2 + $0x40] sm:$0xff]
  %v1180 = vld [vmem:[%s2 + $0x48] sm:$0xff]
  %v1181 = vld [vmem:[%s2 + $0x50] sm:$0xff]
  %v1182 = vld [vmem:[%s2 + $0x58] sm:$0xff]
  %v1183 = vld [vmem:[%s2 + $0x60] sm:$0xff]
  %v1184 = vld [vmem:[%s2 + $0x68] sm:$0xff]
  %v1185 = vld [vmem:[%s2 + $0x70] sm:$0xff]
  %v1186 = vld [vmem:[%s2 + $0x78] sm:$0xff]
  %v1187 = vld [vmem:[%s2 + $0x80] sm:$0xff]
  %v1188 = vld [vmem:[%s2 + $0x88] sm:$0xff]
  %v1189 = vld [vmem:[%s2 + $0x90] sm:$0xff]
  %v1190 = vld [vmem:[%s2 + $0x98] sm:$0xff]
  %v1191 = vld [vmem:[%s2 + $0xa0] sm:$0xff]
  %v1192 = vld [vmem:[%s2 + $0xa8] sm:$0xff]
  %v1193 = vld [vmem:[%s2 + $0xb0] sm:$0xff]
  %v1194 = vld [vmem:[%s2 + $0xb8] sm:$0xff]
  %v1195 = vld [vmem:[%s2 + $0xc0] sm:$0xff]
  %v1196 = vld [vmem:[%s2 + $0xc8] sm:$0xff]
  %v1197 = vld [vmem:[%s2 + $0xd0] sm:$0xff]
  %v1198 = vld [vmem:[%s2 + $0xd8] sm:$0xff]
  %v1199 = vld [vmem:[%s2 + $0xe0] sm:$0xff]
  %v1200 = vld [vmem:[%s2 + $0xe8] sm:$0xff]
  %v1201 = vld [vmem:[%s2 + $0xf0] sm:$0xff]
  %v1202 = vld [vmem:[%s2 + $0xf8] sm:$0xff]
  %v1235 = vunpack.c.l.b16 %v1171
  %v1236 = vunpack.c.h.b16 %v1171
  %v1237 = vunpack.c.l.b16 %v1172
  %v1238 = vunpack.c.h.b16 %v1172
  %v1239 = vunpack.c.l.b16 %v1173
  %v1240 = vunpack.c.h.b16 %v1173
  %v1241 = vunpack.c.l.b16 %v1174
  %v1242 = vunpack.c.h.b16 %v1174
  %v1243 = vunpack.c.l.b16 %v1175
  %v1244 = vunpack.c.h.b16 %v1175
  %v1245 = vunpack.c.l.b16 %v1176
  %v1246 = vunpack.c.h.b16 %v1176
  %v1247 = vunpack.c.l.b16 %v1177
  %v1248 = vunpack.c.h.b16 %v1177
  %v1249 = vunpack.c.l.b16 %v1178
  %v1250 = vunpack.c.h.b16 %v1178
  %v1251 = vunpack.c.l.b16 %v1179
  %v1252 = vunpack.c.h.b16 %v1179
  %v1253 = vunpack.c.l.b16 %v1180
  %v1254 = vunpack.c.h.b16 %v1180
  %v1255 = vunpack.c.l.b16 %v1181
  %v1256 = vunpack.c.h.b16 %v1181
  %v1257 = vunpack.c.l.b16 %v1182
  %v1258 = vunpack.c.h.b16 %v1182
  %v1259 = vunpack.c.l.b16 %v1183
  %v1260 = vunpack.c.h.b16 %v1183
  %v1261 = vunpack.c.l.b16 %v1184
  %v1262 = vunpack.c.h.b16 %v1184
  %v1263 = vunpack.c.l.b16 %v1185
  %v1264 = vunpack.c.h.b16 %v1185
  %v1265 = vunpack.c.l.b16 %v1186
  %v1266 = vunpack.c.h.b16 %v1186
  %v1267 = vunpack.c.l.b16 %v1187
  %v1268 = vunpack.c.h.b16 %v1187
  %v1269 = vunpack.c.l.b16 %v1188
  %v1270 = vunpack.c.h.b16 %v1188
  %v1271 = vunpack.c.l.b16 %v1189
  %v1272 = vunpack.c.h.b16 %v1189
  %v1273 = vunpack.c.l.b16 %v1190
  %v1274 = vunpack.c.h.b16 %v1190
  %v1275 = vunpack.c.l.b16 %v1191
  %v1276 = vunpack.c.h.b16 %v1191
  %v1277 = vunpack.c.l.b16 %v1192
  %v1278 = vunpack.c.h.b16 %v1192
  %v1279 = vunpack.c.l.b16 %v1193
  %v1280 = vunpack.c.h.b16 %v1193
  %v1281 = vunpack.c.l.b16 %v1194
  %v1282 = vunpack.c.h.b16 %v1194
  %v1283 = vunpack.c.l.b16 %v1195
  %v1284 = vunpack.c.h.b16 %v1195
  %v1285 = vunpack.c.l.b16 %v1196
  %v1286 = vunpack.c.h.b16 %v1196
  %v1287 = vunpack.c.l.b16 %v1197
  %v1288 = vunpack.c.h.b16 %v1197
  %v1289 = vunpack.c.l.b16 %v1198
  %v1290 = vunpack.c.h.b16 %v1198
  %v1291 = vunpack.c.l.b16 %v1199
  %v1292 = vunpack.c.h.b16 %v1199
  %v1293 = vunpack.c.l.b16 %v1200
  %v1294 = vunpack.c.h.b16 %v1200
  %v1295 = vunpack.c.l.b16 %v1201
  %v1296 = vunpack.c.h.b16 %v1201
  %v1297 = vunpack.c.l.b16 %v1202
  %v1298 = vunpack.c.h.b16 %v1202
  %v1299 = vpack.c.b16 %v1237, %v1235
  %v1300 = vpack.c.b16 %v1238, %v1236
  %v1301 = vpack.c.b16 %v1241, %v1239
  %v1302 = vpack.c.b16 %v1242, %v1240
  %v1303 = vpack.c.b16 %v1245, %v1243
  %v1304 = vpack.c.b16 %v1246, %v1244
  %v1305 = vpack.c.b16 %v1249, %v1247
  %v1306 = vpack.c.b16 %v1250, %v1248
  %v1307 = vpack.c.b16 %v1253, %v1251
  %v1308 = vpack.c.b16 %v1254, %v1252
  %v1309 = vpack.c.b16 %v1257, %v1255
  %v1310 = vpack.c.b16 %v1258, %v1256
  %v1311 = vpack.c.b16 %v1261, %v1259
  %v1312 = vpack.c.b16 %v1262, %v1260
  %v1313 = vpack.c.b16 %v1265, %v1263
  %v1314 = vpack.c.b16 %v1266, %v1264
  %v1315 = vpack.c.b16 %v1269, %v1267
  %v1316 = vpack.c.b16 %v1270, %v1268
  %v1317 = vpack.c.b16 %v1273, %v1271
  %v1318 = vpack.c.b16 %v1274, %v1272
  %v1319 = vpack.c.b16 %v1277, %v1275
  %v1320 = vpack.c.b16 %v1278, %v1276
  %v1321 = vpack.c.b16 %v1281, %v1279
  %v1322 = vpack.c.b16 %v1282, %v1280
  %v1323 = vpack.c.b16 %v1285, %v1283
  %v1324 = vpack.c.b16 %v1286, %v1284
  %v1325 = vpack.c.b16 %v1289, %v1287
  %v1326 = vpack.c.b16 %v1290, %v1288
  %v1327 = vpack.c.b16 %v1293, %v1291
  %v1328 = vpack.c.b16 %v1294, %v1292
  %v1329 = vpack.c.b16 %v1297, %v1295
  %v1330 = vpack.c.b16 %v1298, %v1296
  %1363 = vmatprep.subr.bf16.mxu0 %v1300
  %1364 = vmatpush1.bf16.msra.mxu0 %v1299
  %1365 = vmatprep.subr.bf16.mxu0 %v1302
  %1366 = vmatpush1.bf16.msra.mxu0 %v1301
  %1367 = vmatprep.subr.bf16.mxu0 %v1304
  %1368 = vmatpush1.bf16.msra.mxu0 %v1303
  %1369 = vmatprep.subr.bf16.mxu0 %v1306
  %1370 = vmatpush1.bf16.msra.mxu0 %v1305
  %1371 = vmatprep.subr.bf16.mxu0 %v1308
  %1372 = vmatpush1.bf16.msra.mxu0 %v1307
  %1373 = vmatprep.subr.bf16.mxu0 %v1310
  %1374 = vmatpush1.bf16.msra.mxu0 %v1309
  %1375 = vmatprep.subr.bf16.mxu0 %v1312
  %1376 = vmatpush1.bf16.msra.mxu0 %v1311
  %1377 = vmatprep.subr.bf16.mxu0 %v1314
  %1378 = vmatpush1.bf16.msra.mxu0 %v1313
  %1379 = vmatprep.subr.bf16.mxu0 %v1316
  %1380 = vmatpush1.bf16.msra.mxu0 %v1315
  %1381 = vmatprep.subr.bf16.mxu0 %v1318
  %1382 = vmatpush1.bf16.msra.mxu0 %v1317
  %1383 = vmatprep.subr.bf16.mxu0 %v1320
  %1384 = vmatpush1.bf16.msra.mxu0 %v1319
  %1385 = vmatprep.subr.bf16.mxu0 %v1322
  %1386 = vmatpush1.bf16.msra.mxu0 %v1321
  %1387 = vmatprep.subr.bf16.mxu0 %v1324
  %1388 = vmatpush1.bf16.msra.mxu0 %v1323
  %1389 = vmatprep.subr.bf16.mxu0 %v1326
  %1390 = vmatpush1.bf16.msra.mxu0 %v1325
  %1391 = vmatprep.subr.bf16.mxu0 %v1328
  %1392 = vmatpush1.bf16.msra.mxu0 %v1327
  %1393 = vmatprep.subr.bf16.mxu0 %v1330
  %1394 = vmatpush1.bf16.msra.mxu0 %v1329
  %1395 = vmatprep.mubr.bf16.mxu0 %v1168
  %1396 = vmatmul.mubr.bf16.gmra.mrb[0].mxu0 %v1167
  %v1397 = vpop.f32.mrb[0].mxu0
  %v1398 = vadd.f32 0.0, %v1397
  %v1399 = vpop.f32.mrb[0].mxu0
  %v1400 = vadd.f32 0.0, %v1399
  %v1401 = vpop.f32.mrb[0].mxu0
  %v1402 = vadd.f32 0.0, %v1401
  %v1403 = vpop.f32.mrb[0].mxu0
  %v1404 = vadd.f32 0.0, %v1403
  %1405 = vmatprep.mubr.bf16.mxu0 %v1170
  %1406 = vmatmul.mubr.bf16.gmra.mrb[0].mxu0 %v1169
  %v1407 = vpop.f32.mrb[0].mxu0
  %v1408 = vadd.f32 0.0, %v1407
  %v1409 = vpop.f32.mrb[0].mxu0
  %v1410 = vadd.f32 0.0, %v1409
  %v1411 = vpop.f32.mrb[0].mxu0
  %v1412 = vadd.f32 0.0, %v1411
  %v1413 = vpop.f32.mrb[0].mxu0
  %v1414 = vadd.f32 0.0, %v1413
  %1415 = vdwg.mxu0
  %v1416 = vadd.f32 %v1400, %v595
  %v1417 = vadd.f32 %v1404, %v595
  %v1418 = vadd.f32 %v1410, %v595
  %v1419 = vadd.f32 %v1414, %v595
  %v1420 = vtanh.pop %v1416
  %v1421 = vtanh.pop %v1417
  %v1422 = vtanh.pop %v1418
  %v1423 = vtanh.pop %v1419
  %1424 = vst [vmem:[%s5 + $0x60] sm:$0xff] %v1420
  %1425 = vst [vmem:[%s5 + $0x68] sm:$0xff] %v1421
  %1426 = vst [vmem:[%s5 + $0x70] sm:$0xff] %v1422
  %1427 = vst [vmem:[%s5 + $0x78] sm:$0xff] %v1423
  %v1428 = vld [vmem:[#allocation2 + $0x80] sm:$0xff]
  %v1429 = vld [vmem:[#allocation2 + $0x88] sm:$0xff]
  %v1430 = vld [vmem:[#allocation2 + $0x90] sm:$0xff]
  %v1431 = vld [vmem:[#allocation2 + $0x98] sm:$0xff]
  %v1432 = vadd.f32 %v1398, %v1428
  %v1433 = vadd.f32 %v1402, %v1429
  %v1434 = vadd.f32 %v1408, %v1430
  %v1435 = vadd.f32 %v1412, %v1431
  %v1436 = vtanh.pop %v1432
  %v1437 = vtanh.pop %v1433
  %v1438 = vtanh.pop %v1434
  %v1439 = vtanh.pop %v1435
  %v1440 = vpack.c.bf16 %v1437, %v1436
  %v1441 = vpack.c.bf16 %v1421, %v1420
  %v1442 = vpack.c.bf16 %v1439, %v1438
  %v1443 = vpack.c.bf16 %v1423, %v1422
  %v1444 = vld [vmem:[%s2] sm:$0xff]
  %v1445 = vld [vmem:[%s2 + $0x8] sm:$0xff]
  %v1446 = vld [vmem:[%s2 + $0x10] sm:$0xff]
  %v1447 = vld [vmem:[%s2 + $0x18] sm:$0xff]
  %v1448 = vld [vmem:[%s2 + $0x20] sm:$0xff]
  %v1449 = vld [vmem:[%s2 + $0x28] sm:$0xff]
  %v1450 = vld [vmem:[%s2 + $0x30] sm:$0xff]
  %v1451 = vld [vmem:[%s2 + $0x38] sm:$0xff]
  %v1452 = vld [vmem:[%s2 + $0x40] sm:$0xff]
  %v1453 = vld [vmem:[%s2 + $0x48] sm:$0xff]
  %v1454 = vld [vmem:[%s2 + $0x50] sm:$0xff]
  %v1455 = vld [vmem:[%s2 + $0x58] sm:$0xff]
  %v1456 = vld [vmem:[%s2 + $0x60] sm:$0xff]
  %v1457 = vld [vmem:[%s2 + $0x68] sm:$0xff]
  %v1458 = vld [vmem:[%s2 + $0x70] sm:$0xff]
  %v1459 = vld [vmem:[%s2 + $0x78] sm:$0xff]
  %v1460 = vld [vmem:[%s2 + $0x80] sm:$0xff]
  %v1461 = vld [vmem:[%s2 + $0x88] sm:$0xff]
  %v1462 = vld [vmem:[%s2 + $0x90] sm:$0xff]
  %v1463 = vld [vmem:[%s2 + $0x98] sm:$0xff]
  %v1464 = vld [vmem:[%s2 + $0xa0] sm:$0xff]
  %v1465 = vld [vmem:[%s2 + $0xa8] sm:$0xff]
  %v1466 = vld [vmem:[%s2 + $0xb0] sm:$0xff]
  %v1467 = vld [vmem:[%s2 + $0xb8] sm:$0xff]
  %v1468 = vld [vmem:[%s2 + $0xc0] sm:$0xff]
  %v1469 = vld [vmem:[%s2 + $0xc8] sm:$0xff]
  %v1470 = vld [vmem:[%s2 + $0xd0] sm:$0xff]
  %v1471 = vld [vmem:[%s2 + $0xd8] sm:$0xff]
  %v1472 = vld [vmem:[%s2 + $0xe0] sm:$0xff]
  %v1473 = vld [vmem:[%s2 + $0xe8] sm:$0xff]
  %v1474 = vld [vmem:[%s2 + $0xf0] sm:$0xff]
  %v1475 = vld [vmem:[%s2 + $0xf8] sm:$0xff]
  %v1508 = vunpack.c.l.b16 %v1444
  %v1509 = vunpack.c.h.b16 %v1444
  %v1510 = vunpack.c.l.b16 %v1445
  %v1511 = vunpack.c.h.b16 %v1445
  %v1512 = vunpack.c.l.b16 %v1446
  %v1513 = vunpack.c.h.b16 %v1446
  %v1514 = vunpack.c.l.b16 %v1447
  %v1515 = vunpack.c.h.b16 %v1447
  %v1516 = vunpack.c.l.b16 %v1448
  %v1517 = vunpack.c.h.b16 %v1448
  %v1518 = vunpack.c.l.b16 %v1449
  %v1519 = vunpack.c.h.b16 %v1449
  %v1520 = vunpack.c.l.b16 %v1450
  %v1521 = vunpack.c.h.b16 %v1450
  %v1522 = vunpack.c.l.b16 %v1451
  %v1523 = vunpack.c.h.b16 %v1451
  %v1524 = vunpack.c.l.b16 %v1452
  %v1525 = vunpack.c.h.b16 %v1452
  %v1526 = vunpack.c.l.b16 %v1453
  %v1527 = vunpack.c.h.b16 %v1453
  %v1528 = vunpack.c.l.b16 %v1454
  %v1529 = vunpack.c.h.b16 %v1454
  %v1530 = vunpack.c.l.b16 %v1455
  %v1531 = vunpack.c.h.b16 %v1455
  %v1532 = vunpack.c.l.b16 %v1456
  %v1533 = vunpack.c.h.b16 %v1456
  %v1534 = vunpack.c.l.b16 %v1457
  %v1535 = vunpack.c.h.b16 %v1457
  %v1536 = vunpack.c.l.b16 %v1458
  %v1537 = vunpack.c.h.b16 %v1458
  %v1538 = vunpack.c.l.b16 %v1459
  %v1539 = vunpack.c.h.b16 %v1459
  %v1540 = vunpack.c.l.b16 %v1460
  %v1541 = vunpack.c.h.b16 %v1460
  %v1542 = vunpack.c.l.b16 %v1461
  %v1543 = vunpack.c.h.b16 %v1461
  %v1544 = vunpack.c.l.b16 %v1462
  %v1545 = vunpack.c.h.b16 %v1462
  %v1546 = vunpack.c.l.b16 %v1463
  %v1547 = vunpack.c.h.b16 %v1463
  %v1548 = vunpack.c.l.b16 %v1464
  %v1549 = vunpack.c.h.b16 %v1464
  %v1550 = vunpack.c.l.b16 %v1465
  %v1551 = vunpack.c.h.b16 %v1465
  %v1552 = vunpack.c.l.b16 %v1466
  %v1553 = vunpack.c.h.b16 %v1466
  %v1554 = vunpack.c.l.b16 %v1467
  %v1555 = vunpack.c.h.b16 %v1467
  %v1556 = vunpack.c.l.b16 %v1468
  %v1557 = vunpack.c.h.b16 %v1468
  %v1558 = vunpack.c.l.b16 %v1469
  %v1559 = vunpack.c.h.b16 %v1469
  %v1560 = vunpack.c.l.b16 %v1470
  %v1561 = vunpack.c.h.b16 %v1470
  %v1562 = vunpack.c.l.b16 %v1471
  %v1563 = vunpack.c.h.b16 %v1471
  %v1564 = vunpack.c.l.b16 %v1472
  %v1565 = vunpack.c.h.b16 %v1472
  %v1566 = vunpack.c.l.b16 %v1473
  %v1567 = vunpack.c.h.b16 %v1473
  %v1568 = vunpack.c.l.b16 %v1474
  %v1569 = vunpack.c.h.b16 %v1474
  %v1570 = vunpack.c.l.b16 %v1475
  %v1571 = vunpack.c.h.b16 %v1475
  %v1572 = vpack.c.b16 %v1510, %v1508
  %v1573 = vpack.c.b16 %v1511, %v1509
  %v1574 = vpack.c.b16 %v1514, %v1512
  %v1575 = vpack.c.b16 %v1515, %v1513
  %v1576 = vpack.c.b16 %v1518, %v1516
  %v1577 = vpack.c.b16 %v1519, %v1517
  %v1578 = vpack.c.b16 %v1522, %v1520
  %v1579 = vpack.c.b16 %v1523, %v1521
  %v1580 = vpack.c.b16 %v1526, %v1524
  %v1581 = vpack.c.b16 %v1527, %v1525
  %v1582 = vpack.c.b16 %v1530, %v1528
  %v1583 = vpack.c.b16 %v1531, %v1529
  %v1584 = vpack.c.b16 %v1534, %v1532
  %v1585 = vpack.c.b16 %v1535, %v1533
  %v1586 = vpack.c.b16 %v1538, %v1536
  %v1587 = vpack.c.b16 %v1539, %v1537
  %v1588 = vpack.c.b16 %v1542, %v1540
  %v1589 = vpack.c.b16 %v1543, %v1541
  %v1590 = vpack.c.b16 %v1546, %v1544
  %v1591 = vpack.c.b16 %v1547, %v1545
  %v1592 = vpack.c.b16 %v1550, %v1548
  %v1593 = vpack.c.b16 %v1551, %v1549
  %v1594 = vpack.c.b16 %v1554, %v1552
  %v1595 = vpack.c.b16 %v1555, %v1553
  %v1596 = vpack.c.b16 %v1558, %v1556
  %v1597 = vpack.c.b16 %v1559, %v1557
  %v1598 = vpack.c.b16 %v1562, %v1560
  %v1599 = vpack.c.b16 %v1563, %v1561
  %v1600 = vpack.c.b16 %v1566, %v1564
  %v1601 = vpack.c.b16 %v1567, %v1565
  %v1602 = vpack.c.b16 %v1570, %v1568
  %v1603 = vpack.c.b16 %v1571, %v1569
  %1636 = vmatprep.subr.bf16.mxu0 %v1573
  %1637 = vmatpush1.bf16.msra.mxu0 %v1572
  %1638 = vmatprep.subr.bf16.mxu0 %v1575
  %1639 = vmatpush1.bf16.msra.mxu0 %v1574
  %1640 = vmatprep.subr.bf16.mxu0 %v1577
  %1641 = vmatpush1.bf16.msra.mxu0 %v1576
  %1642 = vmatprep.subr.bf16.mxu0 %v1579
  %1643 = vmatpush1.bf16.msra.mxu0 %v1578
  %1644 = vmatprep.subr.bf16.mxu0 %v1581
  %1645 = vmatpush1.bf16.msra.mxu0 %v1580
  %1646 = vmatprep.subr.bf16.mxu0 %v1583
  %1647 = vmatpush1.bf16.msra.mxu0 %v1582
  %1648 = vmatprep.subr.bf16.mxu0 %v1585
  %1649 = vmatpush1.bf16.msra.mxu0 %v1584
  %1650 = vmatprep.subr.bf16.mxu0 %v1587
  %1651 = vmatpush1.bf16.msra.mxu0 %v1586
  %1652 = vmatprep.subr.bf16.mxu0 %v1589
  %1653 = vmatpush1.bf16.msra.mxu0 %v1588
  %1654 = vmatprep.subr.bf16.mxu0 %v1591
  %1655 = vmatpush1.bf16.msra.mxu0 %v1590
  %1656 = vmatprep.subr.bf16.mxu0 %v1593
  %1657 = vmatpush1.bf16.msra.mxu0 %v1592
  %1658 = vmatprep.subr.bf16.mxu0 %v1595
  %1659 = vmatpush1.bf16.msra.mxu0 %v1594
  %1660 = vmatprep.subr.bf16.mxu0 %v1597
  %1661 = vmatpush1.bf16.msra.mxu0 %v1596
  %1662 = vmatprep.subr.bf16.mxu0 %v1599
  %1663 = vmatpush1.bf16.msra.mxu0 %v1598
  %1664 = vmatprep.subr.bf16.mxu0 %v1601
  %1665 = vmatpush1.bf16.msra.mxu0 %v1600
  %1666 = vmatprep.subr.bf16.mxu0 %v1603
  %1667 = vmatpush1.bf16.msra.mxu0 %v1602
  %1668 = vmatprep.mubr.bf16.mxu0 %v1441
  %1669 = vmatmul.mubr.bf16.gmra.mrb[0].mxu0 %v1440
  %v1670 = vpop.f32.mrb[0].mxu0
  %v1671 = vadd.f32 0.0, %v1670
  %v1672 = vpop.f32.mrb[0].mxu0
  %v1673 = vadd.f32 0.0, %v1672
  %v1674 = vpop.f32.mrb[0].mxu0
  %v1675 = vadd.f32 0.0, %v1674
  %v1676 = vpop.f32.mrb[0].mxu0
  %v1677 = vadd.f32 0.0, %v1676
  %1678 = vmatprep.mubr.bf16.mxu0 %v1443
  %1679 = vmatmul.mubr.bf16.gmra.mrb[0].mxu0 %v1442
  %v1680 = vpop.f32.mrb[0].mxu0
  %v1681 = vadd.f32 0.0, %v1680
  %v1682 = vpop.f32.mrb[0].mxu0
  %v1683 = vadd.f32 0.0, %v1682
  %v1684 = vpop.f32.mrb[0].mxu0
  %v1685 = vadd.f32 0.0, %v1684
  %v1686 = vpop.f32.mrb[0].mxu0
  %v1687 = vadd.f32 0.0, %v1686
  %1688 = vdwg.mxu0
  %v1689 = vadd.f32 %v1673, %v595
  %v1690 = vadd.f32 %v1677, %v595
  %v1691 = vadd.f32 %v1683, %v595
  %v1692 = vadd.f32 %v1687, %v595
  %v1693 = vtanh.pop %v1689
  %v1694 = vtanh.pop %v1690
  %v1695 = vtanh.pop %v1691
  %v1696 = vtanh.pop %v1692
  %1697 = vst [vmem:[%s5 + $0x80] sm:$0xff] %v1693
  %1698 = vst [vmem:[%s5 + $0x88] sm:$0xff] %v1694
  %1699 = vst [vmem:[%s5 + $0x90] sm:$0xff] %v1695
  %1700 = vst [vmem:[%s5 + $0x98] sm:$0xff] %v1696
  %v1701 = vld [vmem:[#allocation2 + $0xa0] sm:$0xff]
  %v1702 = vld [vmem:[#allocation2 + $0xa8] sm:$0xff]
  %v1703 = vld [vmem:[#allocation2 + $0xb0] sm:$0xff]
  %v1704 = vld [vmem:[#allocation2 + $0xb8] sm:$0xff]
  %v1705 = vadd.f32 %v1671, %v1701
  %v1706 = vadd.f32 %v1675, %v1702
  %v1707 = vadd.f32 %v1681, %v1703
  %v1708 = vadd.f32 %v1685, %v1704
  %v1709 = vtanh.pop %v1705
  %v1710 = vtanh.pop %v1706
  %v1711 = vtanh.pop %v1707
  %v1712 = vtanh.pop %v1708
  %v1713 = vpack.c.bf16 %v1710, %v1709
  %v1714 = vpack.c.bf16 %v1694, %v1693
  %v1715 = vpack.c.bf16 %v1712, %v1711
  %v1716 = vpack.c.bf16 %v1696, %v1695
  %v1717 = vld [vmem:[%s2] sm:$0xff]
  %v1718 = vld [vmem:[%s2 + $0x8] sm:$0xff]
  %v1719 = vld [vmem:[%s2 + $0x10] sm:$0xff]
  %v1720 = vld [vmem:[%s2 + $0x18] sm:$0xff]
  %v1721 = vld [vmem:[%s2 + $0x20] sm:$0xff]
  %v1722 = vld [vmem:[%s2 + $0x28] sm:$0xff]
  %v1723 = vld [vmem:[%s2 + $0x30] sm:$0xff]
  %v1724 = vld [vmem:[%s2 + $0x38] sm:$0xff]
  %v1725 = vld [vmem:[%s2 + $0x40] sm:$0xff]
  %v1726 = vld [vmem:[%s2 + $0x48] sm:$0xff]
  %v1727 = vld [vmem:[%s2 + $0x50] sm:$0xff]
  %v1728 = vld [vmem:[%s2 + $0x58] sm:$0xff]
  %v1729 = vld [vmem:[%s2 + $0x60] sm:$0xff]
  %v1730 = vld [vmem:[%s2 + $0x68] sm:$0xff]
  %v1731 = vld [vmem:[%s2 + $0x70] sm:$0xff]
  %v1732 = vld [vmem:[%s2 + $0x78] sm:$0xff]
  %v1733 = vld [vmem:[%s2 + $0x80] sm:$0xff]
  %v1734 = vld [vmem:[%s2 + $0x88] sm:$0xff]
  %v1735 = vld [vmem:[%s2 + $0x90] sm:$0xff]
  %v1736 = vld [vmem:[%s2 + $0x98] sm:$0xff]
  %v1737 = vld [vmem:[%s2 + $0xa0] sm:$0xff]
  %v1738 = vld [vmem:[%s2 + $0xa8] sm:$0xff]
  %v1739 = vld [vmem:[%s2 + $0xb0] sm:$0xff]
  %v1740 = vld [vmem:[%s2 + $0xb8] sm:$0xff]
  %v1741 = vld [vmem:[%s2 + $0xc0] sm:$0xff]
  %v1742 = vld [vmem:[%s2 + $0xc8] sm:$0xff]
  %v1743 = vld [vmem:[%s2 + $0xd0] sm:$0xff]
  %v1744 = vld [vmem:[%s2 + $0xd8] sm:$0xff]
  %v1745 = vld [vmem:[%s2 + $0xe0] sm:$0xff]
  %v1746 = vld [vmem:[%s2 + $0xe8] sm:$0xff]
  %v1747 = vld [vmem:[%s2 + $0xf0] sm:$0xff]
  %v1748 = vld [vmem:[%s2 + $0xf8] sm:$0xff]
  %v1781 = vunpack.c.l.b16 %v1717
  %v1782 = vunpack.c.h.b16 %v1717
  %v1783 = vunpack.c.l.b16 %v1718
  %v1784 = vunpack.c.h.b16 %v1718
  %v1785 = vunpack.c.l.b16 %v1719
  %v1786 = vunpack.c.h.b16 %v1719
  %v1787 = vunpack.c.l.b16 %v1720
  %v1788 = vunpack.c.h.b16 %v1720
  %v1789 = vunpack.c.l.b16 %v1721
  %v1790 = vunpack.c.h.b16 %v1721
  %v1791 = vunpack.c.l.b16 %v1722
  %v1792 = vunpack.c.h.b16 %v1722
  %v1793 = vunpack.c.l.b16 %v1723
  %v1794 = vunpack.c.h.b16 %v1723
  %v1795 = vunpack.c.l.b16 %v1724
  %v1796 = vunpack.c.h.b16 %v1724
  %v1797 = vunpack.c.l.b16 %v1725
  %v1798 = vunpack.c.h.b16 %v1725
  %v1799 = vunpack.c.l.b16 %v1726
  %v1800 = vunpack.c.h.b16 %v1726
  %v1801 = vunpack.c.l.b16 %v1727
  %v1802 = vunpack.c.h.b16 %v1727
  %v1803 = vunpack.c.l.b16 %v1728
  %v1804 = vunpack.c.h.b16 %v1728
  %v1805 = vunpack.c.l.b16 %v1729
  %v1806 = vunpack.c.h.b16 %v1729
  %v1807 = vunpack.c.l.b16 %v1730
  %v1808 = vunpack.c.h.b16 %v1730
  %v1809 = vunpack.c.l.b16 %v1731
  %v1810 = vunpack.c.h.b16 %v1731
  %v1811 = vunpack.c.l.b16 %v1732
  %v1812 = vunpack.c.h.b16 %v1732
  %v1813 = vunpack.c.l.b16 %v1733
  %v1814 = vunpack.c.h.b16 %v1733
  %v1815 = vunpack.c.l.b16 %v1734
  %v1816 = vunpack.c.h.b16 %v1734
  %v1817 = vunpack.c.l.b16 %v1735
  %v1818 = vunpack.c.h.b16 %v1735
  %v1819 = vunpack.c.l.b16 %v1736
  %v1820 = vunpack.c.h.b16 %v1736
  %v1821 = vunpack.c.l.b16 %v1737
  %v1822 = vunpack.c.h.b16 %v1737
  %v1823 = vunpack.c.l.b16 %v1738
  %v1824 = vunpack.c.h.b16 %v1738
  %v1825 = vunpack.c.l.b16 %v1739
  %v1826 = vunpack.c.h.b16 %v1739
  %v1827 = vunpack.c.l.b16 %v1740
  %v1828 = vunpack.c.h.b16 %v1740
  %v1829 = vunpack.c.l.b16 %v1741
  %v1830 = vunpack.c.h.b16 %v1741
  %v1831 = vunpack.c.l.b16 %v1742
  %v1832 = vunpack.c.h.b16 %v1742
  %v1833 = vunpack.c.l.b16 %v1743
  %v1834 = vunpack.c.h.b16 %v1743
  %v1835 = vunpack.c.l.b16 %v1744
  %v1836 = vunpack.c.h.b16 %v1744
  %v1837 = vunpack.c.l.b16 %v1745
  %v1838 = vunpack.c.h.b16 %v1745
  %v1839 = vunpack.c.l.b16 %v1746
  %v1840 = vunpack.c.h.b16 %v1746
  %v1841 = vunpack.c.l.b16 %v1747
  %v1842 = vunpack.c.h.b16 %v1747
  %v1843 = vunpack.c.l.b16 %v1748
  %v1844 = vunpack.c.h.b16 %v1748
  %v1845 = vpack.c.b16 %v1783, %v1781
  %v1846 = vpack.c.b16 %v1784, %v1782
  %v1847 = vpack.c.b16 %v1787, %v1785
  %v1848 = vpack.c.b16 %v1788, %v1786
  %v1849 = vpack.c.b16 %v1791, %v1789
  %v1850 = vpack.c.b16 %v1792, %v1790
  %v1851 = vpack.c.b16 %v1795, %v1793
  %v1852 = vpack.c.b16 %v1796, %v1794
  %v1853 = vpack.c.b16 %v1799, %v1797
  %v1854 = vpack.c.b16 %v1800, %v1798
  %v1855 = vpack.c.b16 %v1803, %v1801
  %v1856 = vpack.c.b16 %v1804, %v1802
  %v1857 = vpack.c.b16 %v1807, %v1805
  %v1858 = vpack.c.b16 %v1808, %v1806
  %v1859 = vpack.c.b16 %v1811, %v1809
  %v1860 = vpack.c.b16 %v1812, %v1810
  %v1861 = vpack.c.b16 %v1815, %v1813
  %v1862 = vpack.c.b16 %v1816, %v1814
  %v1863 = vpack.c.b16 %v1819, %v1817
  %v1864 = vpack.c.b16 %v1820, %v1818
  %v1865 = vpack.c.b16 %v1823, %v1821
  %v1866 = vpack.c.b16 %v1824, %v1822
  %v1867 = vpack.c.b16 %v1827, %v1825
  %v1868 = vpack.c.b16 %v1828, %v1826
  %v1869 = vpack.c.b16 %v1831, %v1829
  %v1870 = vpack.c.b16 %v1832, %v1830
  %v1871 = vpack.c.b16 %v1835, %v1833
  %v1872 = vpack.c.b16 %v1836, %v1834
  %v1873 = vpack.c.b16 %v1839, %v1837
  %v1874 = vpack.c.b16 %v1840, %v1838
  %v1875 = vpack.c.b16 %v1843, %v1841
  %v1876 = vpack.c.b16 %v1844, %v1842
  %1909 = vmatprep.subr.bf16.mxu0 %v1846
  %1910 = vmatpush1.bf16.msra.mxu0 %v1845
  %1911 = vmatprep.subr.bf16.mxu0 %v1848
  %1912 = vmatpush1.bf16.msra.mxu0 %v1847
  %1913 = vmatprep.subr.bf16.mxu0 %v1850
  %1914 = vmatpush1.bf16.msra.mxu0 %v1849
  %1915 = vmatprep.subr.bf16.mxu0 %v1852
  %1916 = vmatpush1.bf16.msra.mxu0 %v1851
  %1917 = vmatprep.subr.bf16.mxu0 %v1854
  %1918 = vmatpush1.bf16.msra.mxu0 %v1853
  %1919 = vmatprep.subr.bf16.mxu0 %v1856
  %1920 = vmatpush1.bf16.msra.mxu0 %v1855
  %1921 = vmatprep.subr.bf16.mxu0 %v1858
  %1922 = vmatpush1.bf16.msra.mxu0 %v1857
  %1923 = vmatprep.subr.bf16.mxu0 %v1860
  %1924 = vmatpush1.bf16.msra.mxu0 %v1859
  %1925 = vmatprep.subr.bf16.mxu0 %v1862
  %1926 = vmatpush1.bf16.msra.mxu0 %v1861
  %1927 = vmatprep.subr.bf16.mxu0 %v1864
  %1928 = vmatpush1.bf16.msra.mxu0 %v1863
  %1929 = vmatprep.subr.bf16.mxu0 %v1866
  %1930 = vmatpush1.bf16.msra.mxu0 %v1865
  %1931 = vmatprep.subr.bf16.mxu0 %v1868
  %1932 = vmatpush1.bf16.msra.mxu0 %v1867
  %1933 = vmatprep.subr.bf16.mxu0 %v1870
  %1934 = vmatpush1.bf16.msra.mxu0 %v1869
  %1935 = vmatprep.subr.bf16.mxu0 %v1872
  %1936 = vmatpush1.bf16.msra.mxu0 %v1871
  %1937 = vmatprep.subr.bf16.mxu0 %v1874
  %1938 = vmatpush1.bf16.msra.mxu0 %v1873
  %1939 = vmatprep.subr.bf16.mxu0 %v1876
  %1940 = vmatpush1.bf16.msra.mxu0 %v1875
  %1941 = vmatprep.mubr.bf16.mxu0 %v1714
  %1942 = vmatmul.mubr.bf16.gmra.mrb[0].mxu0 %v1713
  %v1943 = vpop.f32.mrb[0].mxu0
  %v1944 = vadd.f32 0.0, %v1943
  %v1945 = vpop.f32.mrb[0].mxu0
  %v1946 = vadd.f32 0.0, %v1945
  %v1947 = vpop.f32.mrb[0].mxu0
  %v1948 = vadd.f32 0.0, %v1947
  %v1949 = vpop.f32.mrb[0].mxu0
  %v1950 = vadd.f32 0.0, %v1949
  %1951 = vmatprep.mubr.bf16.mxu0 %v1716
  %1952 = vmatmul.mubr.bf16.gmra.mrb[0].mxu0 %v1715
  %v1953 = vpop.f32.mrb[0].mxu0
  %v1954 = vadd.f32 0.0, %v1953
  %v1955 = vpop.f32.mrb[0].mxu0
  %v1956 = vadd.f32 0.0, %v1955
  %v1957 = vpop.f32.mrb[0].mxu0
  %v1958 = vadd.f32 0.0, %v1957
  %v1959 = vpop.f32.mrb[0].mxu0
  %v1960 = vadd.f32 0.0, %v1959
  %1961 = vdwg.mxu0
  %v1962 = vadd.f32 %v1946, %v595
  %v1963 = vadd.f32 %v1950, %v595
  %v1964 = vadd.f32 %v1956, %v595
  %v1965 = vadd.f32 %v1960, %v595
  %v1966 = vtanh.pop %v1962
  %v1967 = vtanh.pop %v1963
  %v1968 = vtanh.pop %v1964
  %v1969 = vtanh.pop %v1965
  %1970 = vst [vmem:[%s5 + $0xa0] sm:$0xff] %v1966
  %1971 = vst [vmem:[%s5 + $0xa8] sm:$0xff] %v1967
  %1972 = vst [vmem:[%s5 + $0xb0] sm:$0xff] %v1968
  %1973 = vst [vmem:[%s5 + $0xb8] sm:$0xff] %v1969
  %v1974 = vld [vmem:[#allocation2 + $0xc0] sm:$0xff]
  %v1975 = vld [vmem:[#allocation2 + $0xc8] sm:$0xff]
  %v1976 = vld [vmem:[#allocation2 + $0xd0] sm:$0xff]
  %v1977 = vld [vmem:[#allocation2 + $0xd8] sm:$0xff]
  %v1978 = vadd.f32 %v1944, %v1974
  %v1979 = vadd.f32 %v1948, %v1975
  %v1980 = vadd.f32 %v1954, %v1976
  %v1981 = vadd.f32 %v1958, %v1977
  %v1982 = vtanh.pop %v1978
  %v1983 = vtanh.pop %v1979
  %v1984 = vtanh.pop %v1980
  %v1985 = vtanh.pop %v1981
  %v1986 = vpack.c.bf16 %v1983, %v1982
  %v1987 = vpack.c.bf16 %v1967, %v1966
  %v1988 = vpack.c.bf16 %v1985, %v1984
  %v1989 = vpack.c.bf16 %v1969, %v1968
  %v1990 = vld [vmem:[%s2] sm:$0xff]
  %v1991 = vld [vmem:[%s2 + $0x8] sm:$0xff]
  %v1992 = vld [vmem:[%s2 + $0x10] sm:$0xff]
  %v1993 = vld [vmem:[%s2 + $0x18] sm:$0xff]
  %v1994 = vld [vmem:[%s2 + $0x20] sm:$0xff]
  %v1995 = vld [vmem:[%s2 + $0x28] sm:$0xff]
  %v1996 = vld [vmem:[%s2 + $0x30] sm:$0xff]
  %v1997 = vld [vmem:[%s2 + $0x38] sm:$0xff]
  %v1998 = vld [vmem:[%s2 + $0x40] sm:$0xff]
  %v1999 = vld [vmem:[%s2 + $0x48] sm:$0xff]
  %v2000 = vld [vmem:[%s2 + $0x50] sm:$0xff]
  %v2001 = vld [vmem:[%s2 + $0x58] sm:$0xff]
  %v2002 = vld [vmem:[%s2 + $0x60] sm:$0xff]
  %v2003 = vld [vmem:[%s2 + $0x68] sm:$0xff]
  %v2004 = vld [vmem:[%s2 + $0x70] sm:$0xff]
  %v2005 = vld [vmem:[%s2 + $0x78] sm:$0xff]
  %v2006 = vld [vmem:[%s2 + $0x80] sm:$0xff]
  %v2007 = vld [vmem:[%s2 + $0x88] sm:$0xff]
  %v2008 = vld [vmem:[%s2 + $0x90] sm:$0xff]
  %v2009 = vld [vmem:[%s2 + $0x98] sm:$0xff]
  %v2010 = vld [vmem:[%s2 + $0xa0] sm:$0xff]
  %v2011 = vld [vmem:[%s2 + $0xa8] sm:$0xff]
  %v2012 = vld [vmem:[%s2 + $0xb0] sm:$0xff]
  %v2013 = vld [vmem:[%s2 + $0xb8] sm:$0xff]
  %v2014 = vld [vmem:[%s2 + $0xc0] sm:$0xff]
  %v2015 = vld [vmem:[%s2 + $0xc8] sm:$0xff]
  %v2016 = vld [vmem:[%s2 + $0xd0] sm:$0xff]
  %v2017 = vld [vmem:[%s2 + $0xd8] sm:$0xff]
  %v2018 = vld [vmem:[%s2 + $0xe0] sm:$0xff]
  %v2019 = vld [vmem:[%s2 + $0xe8] sm:$0xff]
  %v2020 = vld [vmem:[%s2 + $0xf0] sm:$0xff]
  %v2021 = vld [vmem:[%s2 + $0xf8] sm:$0xff]
  %v2054 = vunpack.c.l.b16 %v1990
  %v2055 = vunpack.c.h.b16 %v1990
  %v2056 = vunpack.c.l.b16 %v1991
  %v2057 = vunpack.c.h.b16 %v1991
  %v2058 = vunpack.c.l.b16 %v1992
  %v2059 = vunpack.c.h.b16 %v1992
  %v2060 = vunpack.c.l.b16 %v1993
  %v2061 = vunpack.c.h.b16 %v1993
  %v2062 = vunpack.c.l.b16 %v1994
  %v2063 = vunpack.c.h.b16 %v1994
  %v2064 = vunpack.c.l.b16 %v1995
  %v2065 = vunpack.c.h.b16 %v1995
  %v2066 = vunpack.c.l.b16 %v1996
  %v2067 = vunpack.c.h.b16 %v1996
  %v2068 = vunpack.c.l.b16 %v1997
  %v2069 = vunpack.c.h.b16 %v1997
  %v2070 = vunpack.c.l.b16 %v1998
  %v2071 = vunpack.c.h.b16 %v1998
  %v2072 = vunpack.c.l.b16 %v1999
  %v2073 = vunpack.c.h.b16 %v1999
  %v2074 = vunpack.c.l.b16 %v2000
  %v2075 = vunpack.c.h.b16 %v2000
  %v2076 = vunpack.c.l.b16 %v2001
  %v2077 = vunpack.c.h.b16 %v2001
  %v2078 = vunpack.c.l.b16 %v2002
  %v2079 = vunpack.c.h.b16 %v2002
  %v2080 = vunpack.c.l.b16 %v2003
  %v2081 = vunpack.c.h.b16 %v2003
  %v2082 = vunpack.c.l.b16 %v2004
  %v2083 = vunpack.c.h.b16 %v2004
  %v2084 = vunpack.c.l.b16 %v2005
  %v2085 = vunpack.c.h.b16 %v2005
  %v2086 = vunpack.c.l.b16 %v2006
  %v2087 = vunpack.c.h.b16 %v2006
  %v2088 = vunpack.c.l.b16 %v2007
  %v2089 = vunpack.c.h.b16 %v2007
  %v2090 = vunpack.c.l.b16 %v2008
  %v2091 = vunpack.c.h.b16 %v2008
  %v2092 = vunpack.c.l.b16 %v2009
  %v2093 = vunpack.c.h.b16 %v2009
  %v2094 = vunpack.c.l.b16 %v2010
  %v2095 = vunpack.c.h.b16 %v2010
  %v2096 = vunpack.c.l.b16 %v2011
  %v2097 = vunpack.c.h.b16 %v2011
  %v2098 = vunpack.c.l.b16 %v2012
  %v2099 = vunpack.c.h.b16 %v2012
  %v2100 = vunpack.c.l.b16 %v2013
  %v2101 = vunpack.c.h.b16 %v2013
  %v2102 = vunpack.c.l.b16 %v2014
  %v2103 = vunpack.c.h.b16 %v2014
  %v2104 = vunpack.c.l.b16 %v2015
  %v2105 = vunpack.c.h.b16 %v2015
  %v2106 = vunpack.c.l.b16 %v2016
  %v2107 = vunpack.c.h.b16 %v2016
  %v2108 = vunpack.c.l.b16 %v2017
  %v2109 = vunpack.c.h.b16 %v2017
  %v2110 = vunpack.c.l.b16 %v2018
  %v2111 = vunpack.c.h.b16 %v2018
  %v2112 = vunpack.c.l.b16 %v2019
  %v2113 = vunpack.c.h.b16 %v2019
  %v2114 = vunpack.c.l.b16 %v2020
  %v2115 = vunpack.c.h.b16 %v2020
  %v2116 = vunpack.c.l.b16 %v2021
  %v2117 = vunpack.c.h.b16 %v2021
  %v2118 = vpack.c.b16 %v2056, %v2054
  %v2119 = vpack.c.b16 %v2057, %v2055
  %v2120 = vpack.c.b16 %v2060, %v2058
  %v2121 = vpack.c.b16 %v2061, %v2059
  %v2122 = vpack.c.b16 %v2064, %v2062
  %v2123 = vpack.c.b16 %v2065, %v2063
  %v2124 = vpack.c.b16 %v2068, %v2066
  %v2125 = vpack.c.b16 %v2069, %v2067
  %v2126 = vpack.c.b16 %v2072, %v2070
  %v2127 = vpack.c.b16 %v2073, %v2071
  %v2128 = vpack.c.b16 %v2076, %v2074
  %v2129 = vpack.c.b16 %v2077, %v2075
  %v2130 = vpack.c.b16 %v2080, %v2078
  %v2131 = vpack.c.b16 %v2081, %v2079
  %v2132 = vpack.c.b16 %v2084, %v2082
  %v2133 = vpack.c.b16 %v2085, %v2083
  %v2134 = vpack.c.b16 %v2088, %v2086
  %v2135 = vpack.c.b16 %v2089, %v2087
  %v2136 = vpack.c.b16 %v2092, %v2090
  %v2137 = vpack.c.b16 %v2093, %v2091
  %v2138 = vpack.c.b16 %v2096, %v2094
  %v2139 = vpack.c.b16 %v2097, %v2095
  %v2140 = vpack.c.b16 %v2100, %v2098
  %v2141 = vpack.c.b16 %v2101, %v2099
  %v2142 = vpack.c.b16 %v2104, %v2102
  %v2143 = vpack.c.b16 %v2105, %v2103
  %v2144 = vpack.c.b16 %v2108, %v2106
  %v2145 = vpack.c.b16 %v2109, %v2107
  %v2146 = vpack.c.b16 %v2112, %v2110
  %v2147 = vpack.c.b16 %v2113, %v2111
  %v2148 = vpack.c.b16 %v2116, %v2114
  %v2149 = vpack.c.b16 %v2117, %v2115
  %2182 = vmatprep.subr.bf16.mxu0 %v2119
  %2183 = vmatpush1.bf16.msra.mxu0 %v2118
  %2184 = vmatprep.subr.bf16.mxu0 %v2121
  %2185 = vmatpush1.bf16.msra.mxu0 %v2120
  %2186 = vmatprep.subr.bf16.mxu0 %v2123
  %2187 = vmatpush1.bf16.msra.mxu0 %v2122
  %2188 = vmatprep.subr.bf16.mxu0 %v2125
  %2189 = vmatpush1.bf16.msra.mxu0 %v2124
  %2190 = vmatprep.subr.bf16.mxu0 %v2127
  %2191 = vmatpush1.bf16.msra.mxu0 %v2126
  %2192 = vmatprep.subr.bf16.mxu0 %v2129
  %2193 = vmatpush1.bf16.msra.mxu0 %v2128
  %2194 = vmatprep.subr.bf16.mxu0 %v2131
  %2195 = vmatpush1.bf16.msra.mxu0 %v2130
  %2196 = vmatprep.subr.bf16.mxu0 %v2133
  %2197 = vmatpush1.bf16.msra.mxu0 %v2132
  %2198 = vmatprep.subr.bf16.mxu0 %v2135
  %2199 = vmatpush1.bf16.msra.mxu0 %v2134
  %2200 = vmatprep.subr.bf16.mxu0 %v2137
  %2201 = vmatpush1.bf16.msra.mxu0 %v2136
  %2202 = vmatprep.subr.bf16.mxu0 %v2139
  %2203 = vmatpush1.bf16.msra.mxu0 %v2138
  %2204 = vmatprep.subr.bf16.mxu0 %v2141
  %2205 = vmatpush1.bf16.msra.mxu0 %v2140
  %2206 = vmatprep.subr.bf16.mxu0 %v2143
  %2207 = vmatpush1.bf16.msra.mxu0 %v2142
  %2208 = vmatprep.subr.bf16.mxu0 %v2145
  %2209 = vmatpush1.bf16.msra.mxu0 %v2144
  %2210 = vmatprep.subr.bf16.mxu0 %v2147
  %2211 = vmatpush1.bf16.msra.mxu0 %v2146
  %2212 = vmatprep.subr.bf16.mxu0 %v2149
  %2213 = vmatpush1.bf16.msra.mxu0 %v2148
  %2214 = vmatprep.mubr.bf16.mxu0 %v1987
  %2215 = vmatmul.mubr.bf16.gmra.mrb[0].mxu0 %v1986
  %v2216 = vpop.f32.mrb[0].mxu0
  %v2217 = vadd.f32 0.0, %v2216
  %v2218 = vpop.f32.mrb[0].mxu0
  %v2219 = vadd.f32 0.0, %v2218
  %v2220 = vpop.f32.mrb[0].mxu0
  %v2221 = vadd.f32 0.0, %v2220
  %v2222 = vpop.f32.mrb[0].mxu0
  %v2223 = vadd.f32 0.0, %v2222
  %2224 = vmatprep.mubr.bf16.mxu0 %v1989
  %2225 = vmatmul.mubr.bf16.gmra.mrb[0].mxu0 %v1988
  %v2226 = vpop.f32.mrb[0].mxu0
  %v2227 = vadd.f32 0.0, %v2226
  %v2228 = vpop.f32.mrb[0].mxu0
  %v2229 = vadd.f32 0.0, %v2228
  %v2230 = vpop.f32.mrb[0].mxu0
  %v2231 = vadd.f32 0.0, %v2230
  %v2232 = vpop.f32.mrb[0].mxu0
  %v2233 = vadd.f32 0.0, %v2232
  %2234 = vdwg.mxu0
  %v2235 = vadd.f32 %v2219, %v595
  %v2236 = vadd.f32 %v2223, %v595
  %v2237 = vadd.f32 %v2229, %v595
  %v2238 = vadd.f32 %v2233, %v595
  %v2239 = vtanh.pop %v2235
  %v2240 = vtanh.pop %v2236
  %v2241 = vtanh.pop %v2237
  %v2242 = vtanh.pop %v2238
  %2243 = vst [vmem:[%s5 + $0xc0] sm:$0xff] %v2239
  %2244 = vst [vmem:[%s5 + $0xc8] sm:$0xff] %v2240
  %2245 = vst [vmem:[%s5 + $0xd0] sm:$0xff] %v2241
  %2246 = vst [vmem:[%s5 + $0xd8] sm:$0xff] %v2242
  %v2247 = vld [vmem:[#allocation2 + $0xe0] sm:$0xff]
  %v2248 = vld [vmem:[#allocation2 + $0xe8] sm:$0xff]
  %v2249 = vld [vmem:[#allocation2 + $0xf0] sm:$0xff]
  %v2250 = vld [vmem:[#allocation2 + $0xf8] sm:$0xff]
  %v2251 = vadd.f32 %v2217, %v2247
  %v2252 = vadd.f32 %v2221, %v2248
  %v2253 = vadd.f32 %v2227, %v2249
  %v2254 = vadd.f32 %v2231, %v2250
  %v2255 = vtanh.pop %v2251
  %v2256 = vtanh.pop %v2252
  %v2257 = vtanh.pop %v2253
  %v2258 = vtanh.pop %v2254
  %v2259 = vpack.c.bf16 %v2256, %v2255
  %v2260 = vpack.c.bf16 %v2240, %v2239
  %v2261 = vpack.c.bf16 %v2258, %v2257
  %v2262 = vpack.c.bf16 %v2242, %v2241
  %v2263 = vld [vmem:[%s2] sm:$0xff]
  %v2264 = vld [vmem:[%s2 + $0x8] sm:$0xff]
  %v2265 = vld [vmem:[%s2 + $0x10] sm:$0xff]
  %v2266 = vld [vmem:[%s2 + $0x18] sm:$0xff]
  %v2267 = vld [vmem:[%s2 + $0x20] sm:$0xff]
  %v2268 = vld [vmem:[%s2 + $0x28] sm:$0xff]
  %v2269 = vld [vmem:[%s2 + $0x30] sm:$0xff]
  %v2270 = vld [vmem:[%s2 + $0x38] sm:$0xff]
  %v2271 = vld [vmem:[%s2 + $0x40] sm:$0xff]
  %v2272 = vld [vmem:[%s2 + $0x48] sm:$0xff]
  %v2273 = vld [vmem:[%s2 + $0x50] sm:$0xff]
  %v2274 = vld [vmem:[%s2 + $0x58] sm:$0xff]
  %v2275 = vld [vmem:[%s2 + $0x60] sm:$0xff]
  %v2276 = vld [vmem:[%s2 + $0x68] sm:$0xff]
  %v2277 = vld [vmem:[%s2 + $0x70] sm:$0xff]
  %v2278 = vld [vmem:[%s2 + $0x78] sm:$0xff]
  %v2279 = vld [vmem:[%s2 + $0x80] sm:$0xff]
  %v2280 = vld [vmem:[%s2 + $0x88] sm:$0xff]
  %v2281 = vld [vmem:[%s2 + $0x90] sm:$0xff]
  %v2282 = vld [vmem:[%s2 + $0x98] sm:$0xff]
  %v2283 = vld [vmem:[%s2 + $0xa0] sm:$0xff]
  %v2284 = vld [vmem:[%s2 + $0xa8] sm:$0xff]
  %v2285 = vld [vmem:[%s2 + $0xb0] sm:$0xff]
  %v2286 = vld [vmem:[%s2 + $0xb8] sm:$0xff]
  %v2287 = vld [vmem:[%s2 + $0xc0] sm:$0xff]
  %v2288 = vld [vmem:[%s2 + $0xc8] sm:$0xff]
  %v2289 = vld [vmem:[%s2 + $0xd0] sm:$0xff]
  %v2290 = vld [vmem:[%s2 + $0xd8] sm:$0xff]
  %v2291 = vld [vmem:[%s2 + $0xe0] sm:$0xff]
  %v2292 = vld [vmem:[%s2 + $0xe8] sm:$0xff]
  %v2293 = vld [vmem:[%s2 + $0xf0] sm:$0xff]
  %v2294 = vld [vmem:[%s2 + $0xf8] sm:$0xff]
  %v2327 = vunpack.c.l.b16 %v2263
  %v2328 = vunpack.c.h.b16 %v2263
  %v2329 = vunpack.c.l.b16 %v2264
  %v2330 = vunpack.c.h.b16 %v2264
  %v2331 = vunpack.c.l.b16 %v2265
  %v2332 = vunpack.c.h.b16 %v2265
  %v2333 = vunpack.c.l.b16 %v2266
  %v2334 = vunpack.c.h.b16 %v2266
  %v2335 = vunpack.c.l.b16 %v2267
  %v2336 = vunpack.c.h.b16 %v2267
  %v2337 = vunpack.c.l.b16 %v2268
  %v2338 = vunpack.c.h.b16 %v2268
  %v2339 = vunpack.c.l.b16 %v2269
  %v2340 = vunpack.c.h.b16 %v2269
  %v2341 = vunpack.c.l.b16 %v2270
  %v2342 = vunpack.c.h.b16 %v2270
  %v2343 = vunpack.c.l.b16 %v2271
  %v2344 = vunpack.c.h.b16 %v2271
  %v2345 = vunpack.c.l.b16 %v2272
  %v2346 = vunpack.c.h.b16 %v2272
  %v2347 = vunpack.c.l.b16 %v2273
  %v2348 = vunpack.c.h.b16 %v2273
  %v2349 = vunpack.c.l.b16 %v2274
  %v2350 = vunpack.c.h.b16 %v2274
  %v2351 = vunpack.c.l.b16 %v2275
  %v2352 = vunpack.c.h.b16 %v2275
  %v2353 = vunpack.c.l.b16 %v2276
  %v2354 = vunpack.c.h.b16 %v2276
  %v2355 = vunpack.c.l.b16 %v2277
  %v2356 = vunpack.c.h.b16 %v2277
  %v2357 = vunpack.c.l.b16 %v2278
  %v2358 = vunpack.c.h.b16 %v2278
  %v2359 = vunpack.c.l.b16 %v2279
  %v2360 = vunpack.c.h.b16 %v2279
  %v2361 = vunpack.c.l.b16 %v2280
  %v2362 = vunpack.c.h.b16 %v2280
  %v2363 = vunpack.c.l.b16 %v2281
  %v2364 = vunpack.c.h.b16 %v2281
  %v2365 = vunpack.c.l.b16 %v2282
  %v2366 = vunpack.c.h.b16 %v2282
  %v2367 = vunpack.c.l.b16 %v2283
  %v2368 = vunpack.c.h.b16 %v2283
  %v2369 = vunpack.c.l.b16 %v2284
  %v2370 = vunpack.c.h.b16 %v2284
  %v2371 = vunpack.c.l.b16 %v2285
  %v2372 = vunpack.c.h.b16 %v2285
  %v2373 = vunpack.c.l.b16 %v2286
  %v2374 = vunpack.c.h.b16 %v2286
  %v2375 = vunpack.c.l.b16 %v2287
  %v2376 = vunpack.c.h.b16 %v2287
  %v2377 = vunpack.c.l.b16 %v2288
  %v2378 = vunpack.c.h.b16 %v2288
  %v2379 = vunpack.c.l.b16 %v2289
  %v2380 = vunpack.c.h.b16 %v2289
  %v2381 = vunpack.c.l.b16 %v2290
  %v2382 = vunpack.c.h.b16 %v2290
  %v2383 = vunpack.c.l.b16 %v2291
  %v2384 = vunpack.c.h.b16 %v2291
  %v2385 = vunpack.c.l.b16 %v2292
  %v2386 = vunpack.c.h.b16 %v2292
  %v2387 = vunpack.c.l.b16 %v2293
  %v2388 = vunpack.c.h.b16 %v2293
  %v2389 = vunpack.c.l.b16 %v2294
  %v2390 = vunpack.c.h.b16 %v2294
  %v2391 = vpack.c.b16 %v2329, %v2327
  %v2392 = vpack.c.b16 %v2330, %v2328
  %v2393 = vpack.c.b16 %v2333, %v2331
  %v2394 = vpack.c.b16 %v2334, %v2332
  %v2395 = vpack.c.b16 %v2337, %v2335
  %v2396 = vpack.c.b16 %v2338, %v2336
  %v2397 = vpack.c.b16 %v2341, %v2339
  %v2398 = vpack.c.b16 %v2342, %v2340
  %v2399 = vpack.c.b16 %v2345, %v2343
  %v2400 = vpack.c.b16 %v2346, %v2344
  %v2401 = vpack.c.b16 %v2349, %v2347
  %v2402 = vpack.c.b16 %v2350, %v2348
  %v2403 = vpack.c.b16 %v2353, %v2351
  %v2404 = vpack.c.b16 %v2354, %v2352
  %v2405 = vpack.c.b16 %v2357, %v2355
  %v2406 = vpack.c.b16 %v2358, %v2356
  %v2407 = vpack.c.b16 %v2361, %v2359
  %v2408 = vpack.c.b16 %v2362, %v2360
  %v2409 = vpack.c.b16 %v2365, %v2363
  %v2410 = vpack.c.b16 %v2366, %v2364
  %v2411 = vpack.c.b16 %v2369, %v2367
  %v2412 = vpack.c.b16 %v2370, %v2368
  %v2413 = vpack.c.b16 %v2373, %v2371
  %v2414 = vpack.c.b16 %v2374, %v2372
  %v2415 = vpack.c.b16 %v2377, %v2375
  %v2416 = vpack.c.b16 %v2378, %v2376
  %v2417 = vpack.c.b16 %v2381, %v2379
  %v2418 = vpack.c.b16 %v2382, %v2380
  %v2419 = vpack.c.b16 %v2385, %v2383
  %v2420 = vpack.c.b16 %v2386, %v2384
  %v2421 = vpack.c.b16 %v2389, %v2387
  %v2422 = vpack.c.b16 %v2390, %v2388
  %2455 = vmatprep.subr.bf16.mxu0 %v2392
  %2456 = vmatpush1.bf16.msra.mxu0 %v2391
  %2457 = vmatprep.subr.bf16.mxu0 %v2394
  %2458 = vmatpush1.bf16.msra.mxu0 %v2393
  %2459 = vmatprep.subr.bf16.mxu0 %v2396
  %2460 = vmatpush1.bf16.msra.mxu0 %v2395
  %2461 = vmatprep.subr.bf16.mxu0 %v2398
  %2462 = vmatpush1.bf16.msra.mxu0 %v2397
  %2463 = vmatprep.subr.bf16.mxu0 %v2400
  %2464 = vmatpush1.bf16.msra.mxu0 %v2399
  %2465 = vmatprep.subr.bf16.mxu0 %v2402
  %2466 = vmatpush1.bf16.msra.mxu0 %v2401
  %2467 = vmatprep.subr.bf16.mxu0 %v2404
  %2468 = vmatpush1.bf16.msra.mxu0 %v2403
  %2469 = vmatprep.subr.bf16.mxu0 %v2406
  %2470 = vmatpush1.bf16.msra.mxu0 %v2405
  %2471 = vmatprep.subr.bf16.mxu0 %v2408
  %2472 = vmatpush1.bf16.msra.mxu0 %v2407
  %2473 = vmatprep.subr.bf16.mxu0 %v2410
  %2474 = vmatpush1.bf16.msra.mxu0 %v2409
  %2475 = vmatprep.subr.bf16.mxu0 %v2412
  %2476 = vmatpush1.bf16.msra.mxu0 %v2411
  %2477 = vmatprep.subr.bf16.mxu0 %v2414
  %2478 = vmatpush1.bf16.msra.mxu0 %v2413
  %2479 = vmatprep.subr.bf16.mxu0 %v2416
  %2480 = vmatpush1.bf16.msra.mxu0 %v2415
  %2481 = vmatprep.subr.bf16.mxu0 %v2418
  %2482 = vmatpush1.bf16.msra.mxu0 %v2417
  %2483 = vmatprep.subr.bf16.mxu0 %v2420
  %2484 = vmatpush1.bf16.msra.mxu0 %v2419
  %2485 = vmatprep.subr.bf16.mxu0 %v2422
  %2486 = vmatpush1.bf16.msra.mxu0 %v2421
  %2487 = vmatprep.mubr.bf16.mxu0 %v2260
  %2488 = vmatmul.mubr.bf16.gmra.mrb[0].mxu0 %v2259
  %v2489 = vpop.f32.mrb[0].mxu0
  %v2490 = vpop.f32.mrb[0].mxu0
  %v2491 = vadd.f32 0.0, %v2490
  %v2492 = vpop.f32.mrb[0].mxu0
  %v2493 = vpop.f32.mrb[0].mxu0
  %v2494 = vadd.f32 0.0, %v2493
  %2495 = vmatprep.mubr.bf16.mxu0 %v2262
  %2496 = vmatmul.mubr.bf16.gmra.mrb[0].mxu0 %v2261
  %v2497 = vpop.f32.mrb[0].mxu0
  %v2498 = vpop.f32.mrb[0].mxu0
  %v2499 = vadd.f32 0.0, %v2498
  %v2500 = vpop.f32.mrb[0].mxu0
  %v2501 = vpop.f32.mrb[0].mxu0
  %v2502 = vadd.f32 0.0, %v2501
  %2503 = vdwg.mxu0
  %v2504 = vadd.f32 %v2491, %v595
  %v2505 = vadd.f32 %v2494, %v595
  %v2506 = vadd.f32 %v2499, %v595
  %v2507 = vadd.f32 %v2502, %v595
  %v2508 = vtanh.pop %v2504
  %v2509 = vtanh.pop %v2505
  %v2510 = vtanh.pop %v2506
  %v2511 = vtanh.pop %v2507
  %2512 = vst [vmem:[%s5 + $0xe0] sm:$0xff] %v2508
  %2513 = vst [vmem:[%s5 + $0xe8] sm:$0xff] %v2509
  %2514 = vst [vmem:[%s5 + $0xf0] sm:$0xff] %v2510
  %2515 = vst [vmem:[%s5 + $0xf8] sm:$0xff] %v2511
  %2516 = vst [vmem:[%s6] sm:$0xff] %v2255
  %2517 = vst [vmem:[%s6 + $0x8] sm:$0xff] %v2256
  %2518 = vst [vmem:[%s6 + $0x10] sm:$0xff] %v2257
  %2519 = vst [vmem:[%s6 + $0x18] sm:$0xff] %v2258
  // Predicated region
  $region22: #{rnn_forward.1} parent=0 // pred_check
    _
  $region23: #{rnn_forward.1} parent=0 // pred_check_branch
    %2521 = sbr.rel (0) target = $region25
  $region24: #{rnn_forward.1} parent=0 // pred_region
    _
  $region25: #{rnn_forward.1} parent=0 // pred_fallthru
    _
  // Predicated region
  $region26: #{rnn_forward.1} parent=0 // pred_check
    _
  $region27: #{rnn_forward.1} parent=0 // pred_check_branch
    %2523 = sbr.rel (0) target = $region29
  $region28: #{rnn_forward.1} parent=0 // pred_region
    _
  $region29: #{rnn_forward.1} parent=0 // pred_fallthru
    _
  // Predicated region
  $region30: #{rnn_forward.1} parent=0 // pred_check
    _
  $region31: #{rnn_forward.1} parent=0 // pred_check_branch
    %2525 = sbr.rel (0) target = $region33
  $region32: #{rnn_forward.1} parent=0 // pred_region
    _
  $region33: #{rnn_forward.1} parent=0 // pred_fallthru
    _
  // Predicated region
  $region34: #{rnn_forward.1} parent=0 // pred_check
    _
  $region35: #{rnn_forward.1} parent=0 // pred_check_branch
    %2527 = sbr.rel (0) target = $region37
  $region36: #{rnn_forward.1} parent=0 // pred_region
    _
  $region37: #{rnn_forward.1} parent=0 // pred_fallthru
    _

</llo_original>
